<compile_context>
chip_gen: v7x
topology: tpu7x:2x2x1
jax: 0.10.0
libtpu: 0.0.40
codegen_flags: <defaults>
</compile_context>

<pallas_src>
import numpy as np

import jax
import jax.numpy as jnp
from jax.experimental import pallas as pl
from jax.experimental.pallas import tpu as pltpu

# ---- model hyper-parameters (small, consistent with the module) -------------
NUM_LAYERS = 3        # dilations 1, 2, 4
NUM_F_MAPS = 16
DIM = 8               # input feature channels
NUM_CLASSES = 6       # conv_out produces NUM_CLASSES - 1 channels
B = 2
T = 16                # sequence length (time)
HEAD_PAD = 8          # 5 (conv_out) + 1 (conv_bg) + 1 (conv_time) + 1 zero pad
MAX_D = 2 ** (NUM_LAYERS - 1)   # 4
GAP = MAX_D                     # zero gap between flattened batch segments

# ---- packed-parameter layout (row offsets; all sublane-aligned) --------------
W_IN_OFF = 0                                        # 16 rows, cols [0:DIM] used
LAYER_OFF = W_IN_OFF + NUM_F_MAPS                   # per layer: 3 taps + 1x1 = 4 * F rows
HEADS_OFF = LAYER_OFF + NUM_LAYERS * 4 * NUM_F_MAPS  # 8 rows (fused heads)
BIAS_OFF = HEADS_OFF + HEAD_PAD                     # 16 rows, biases packed as COLUMNS
N_PARAM_ROWS = BIAS_OFF + NUM_F_MAPS                # 232 rows total
BIAS_HEAD_COL = 1 + 2 * NUM_LAYERS                  # column 7 holds the fused head bias


def _flat_dims(bsz, t_len):
    """Flattened-time layout: [halo | b0 | gap | b1 | ... | halo]."""
    seg = t_len + GAP                               # stride between batch segment starts
    act_w = bsz * t_len + (bsz - 1) * GAP           # active (flattened) width
    zw = act_w + 2 * MAX_D                          # scratch width incl. halos
    return seg, act_w, zw


# ---- Pallas kernel -----------------------------------------------------------
def _single_stage_kernel(x_ref, mask_ref, p_ref, out_ref, z_ref):
    """Single invocation, no grid: whole batch in VMEM, weights DMA'd once."""
    bsz, dim, t_len = x_ref.shape
    f = NUM_F_MAPS
    seg, act_w, _ = _flat_dims(bsz, t_len)

    # Zero the scratch once: halos and inter-batch gaps stay zero from here on
    # (batch windows are always overwritten, gaps are kept zero by the masked residual).
    z_ref[...] = jnp.zeros(z_ref.shape, z_ref.dtype)

    # Hoisted parameter views: static, sublane-aligned slices of the single flat buffer.
    biases = p_ref[BIAS_OFF:BIAS_OFF + f, :]                 # (F, 16) column-packed biases
    b_in = biases[:, 0:1]                                    # (F, 1)

    # Input 1x1 conv (dim -> F), written straight into the scratch's batch windows.
    w_in = p_ref[W_IN_OFF:W_IN_OFF + f, 0:dim]               # (F, DIM)
    for b in range(bsz):                                     # static unroll (B == 2)
        ob = jnp.dot(w_in, x_ref[b], preferred_element_type=jnp.float32) + b_in
        z_ref[:, MAX_D + b * seg: MAX_D + b * seg + t_len] = ob

    cur = z_ref[:, MAX_D: MAX_D + act_w]                     # (F, act_w); gaps are zero

    # Flattened sequence mask row (zeros in the inter-batch gaps); broadcast hoisted.
    mparts = []
    for b in range(bsz):
        mparts.append(mask_ref[b, 0:1, :])                   # (1, T)
        if b < bsz - 1:
            mparts.append(jnp.zeros((1, GAP), jnp.float32))
    maskr = jnp.concatenate(mparts, axis=1)                  # (1, act_w)
    maskb = jnp.broadcast_to(maskr, (f, act_w))              # hoisted out of the layer loop

    for l in range(NUM_LAYERS):                              # static unroll (3 layers)
        d = 2 ** l
        base = LAYER_OFF + l * 4 * f
        # prev / next taps: static slices of the halo scratch (no concats, no zero-fill).
        prev = z_ref[:, MAX_D - d: MAX_D - d + act_w]        # (F, act_w)
        nxt = z_ref[:, MAX_D + d: MAX_D + d + act_w]         # (F, act_w)
        w_p = p_ref[base: base + f, :]                       # tap k=0 (t - d)
        w_c = p_ref[base + f: base + 2 * f, :]               # tap k=1 (t)
        w_n = p_ref[base + 2 * f: base + 3 * f, :]           # tap k=2 (t + d)
        w_1 = p_ref[base + 3 * f: base + 4 * f, :]           # conv_1x1
        y = (jnp.dot(w_p, prev, preferred_element_type=jnp.float32)
             + jnp.dot(w_c, cur, preferred_element_type=jnp.float32)
             + jnp.dot(w_n, nxt, preferred_element_type=jnp.float32)
             + biases[:, 1 + 2 * l: 2 + 2 * l])
        y = jnp.maximum(y, 0.0)                              # ReLU
        y = jnp.dot(w_1, y, preferred_element_type=jnp.float32) + biases[:, 2 + 2 * l: 3 + 2 * l]
        # dropout: identity in eval mode
        cur = (cur + y) * maskb                              # residual + mask (zeros gaps too)
        if l < NUM_LAYERS - 1:
            z_ref[:, MAX_D: MAX_D + act_w] = cur             # make shifts of cur available

    # Fused output heads [conv_out | conv_bg | conv_time | pad] over the whole flat batch.
    w_h = p_ref[HEADS_OFF: HEADS_OFF + HEAD_PAD, :]          # (HEAD_PAD, F)
    b_h = biases[:HEAD_PAD, BIAS_HEAD_COL: BIAS_HEAD_COL + 1]  # (HEAD_PAD, 1)
    heads = (jnp.dot(w_h, cur, preferred_element_type=jnp.float32) + b_h) * maskr
    for b in range(bsz):
        out_ref[b] = heads[:, b * seg: b * seg + t_len]      # NCT store, no transposes


# ---- one-time parameter packing (numpy; hoisted out of the jitted forward) ---
def pack_params(params):
    """PyTorch-convention conv params -> ONE flat (N_PARAM_ROWS, F) f32 buffer."""
    (w_in, b_in, wd, bd, w1, b1, w_out, b_out, w_bg, b_bg, w_time, b_time) = [
        np.asarray(p, np.float32) for p in params]
    f = NUM_F_MAPS
    P = np.zeros((N_PARAM_ROWS, f), np.float32)

    P[W_IN_OFF:W_IN_OFF + f, :DIM] = w_in[:, :, 0]                       # (F, DIM)
    for l in range(NUM_LAYERS):
        base = LAYER_OFF + l * 4 * f
        for k in range(3):                                               # taps: t-d, t, t+d
            P[base + k * f: base + (k + 1) * f, :] = wd[l, :, :, k]
        P[base + 3 * f: base + 4 * f, :] = w1[l, :, :, 0]                # conv_1x1

    w_h = np.zeros((HEAD_PAD, f), np.float32)
    w_h[:NUM_CLASSES - 1] = w_out[:, :, 0]
    w_h[NUM_CLASSES - 1] = w_bg[0, :, 0]
    w_h[NUM_CLASSES] = w_time[0, :, 0]
    P[HEADS_OFF:HEADS_OFF + HEAD_PAD, :] = w_h

    Bblk = np.zeros((f, f), np.float32)                                  # biases as columns
    Bblk[:, 0] = b_in
    for l in range(NUM_LAYERS):
        Bblk[:, 1 + 2 * l] = bd[l]
        Bblk[:, 2 + 2 * l] = b1[l]
    b_h = np.zeros((HEAD_PAD,), np.float32)
    b_h[:NUM_CLASSES - 1] = b_out
    b_h[NUM_CLASSES - 1] = b_bg[0]
    b_h[NUM_CLASSES] = b_time[0]
    Bblk[:HEAD_PAD, BIAS_HEAD_COL] = b_h
    P[BIAS_OFF:BIAS_OFF + f, :] = Bblk
    return jnp.asarray(P)


# ---- wrapper -----------------------------------------------------------------
def single_stage_model_pallas(x_nct, mask_nct, packed):
    """x_nct: (B, DIM, T); mask_nct: (B, C, T); packed: (N_PARAM_ROWS, F). NCT outputs."""
    bsz, _, t_len = x_nct.shape
    _, _, zw = _flat_dims(bsz, t_len)
    vmem = pl.BlockSpec(memory_space=pltpu.MemorySpace.VMEM)

    heads = pl.pallas_call(
        _single_stage_kernel,
        out_shape=jax.ShapeDtypeStruct((bsz, HEAD_PAD, t_len), jnp.float32),
        in_specs=[vmem, vmem, vmem],
        out_specs=vmem,
        scratch_shapes=[pltpu.VMEM((NUM_F_MAPS, zw), jnp.float32)],
    )(x_nct, mask_nct, packed)

    nc1 = NUM_CLASSES - 1
    return {
        "out_bg": heads[:, nc1:nc1 + 1, :],
        "out_class": heads[:, :nc1, :],
        "out_time": heads[:, nc1 + 1:nc1 + 2, :],
    }


# ---- plain-JAX reference (mirrors the PyTorch module directly) ----------------
def single_stage_model_ref(x, mask, params):
    (w_in, b_in, wd, bd, w1, b1, w_out, b_out, w_bg, b_bg, w_time, b_time) = params
    m = mask[:, 0:1, :]
    t_ = x.shape[-1]

    def conv1x1(z, w, b):
        w2 = w[:, :, 0] if w.ndim == 3 else w
        return jnp.einsum("oi,bit->bot", w2, z) + b[None, :, None]

    out = conv1x1(x, w_in, b_in)
    for l in range(NUM_LAYERS):
        d = 2 ** l
        padded = jnp.pad(out, ((0, 0), (0, 0), (d, d)))
        y = sum(jnp.einsum("oi,bit->bot", wd[l, :, :, k], padded[:, :, k * d:k * d + t_])
                for k in range(3))
        y = y + bd[l][None, :, None]
        y = jnp.maximum(y, 0.0)
        y = conv1x1(y, w1[l], b1[l])
        out = (out + y) * m
    return {
        "out_bg": conv1x1(out, w_bg, b_bg) * m,
        "out_class": conv1x1(out, w_out, b_out) * m,
        "out_time": conv1x1(out, w_time, b_time) * m,
    }


def init_params(key):
    """PyTorch Conv1d-convention shapes: weight (Cout, Cin, K), bias (Cout,)."""
    ks = jax.random.split(key, 12)
    s = 0.1
    n = jax.random.normal
    w_in = s * n(ks[0], (NUM_F_MAPS, DIM, 1), jnp.float32)
    b_in = s * n(ks[1], (NUM_F_MAPS,), jnp.float32)
    wd = s * n(ks[2], (NUM_LAYERS, NUM_F_MAPS, NUM_F_MAPS, 3), jnp.float32)
    bd = s * n(ks[3], (NUM_LAYERS, NUM_F_MAPS), jnp.float32)
    w1 = s * n(ks[4], (NUM_LAYERS, NUM_F_MAPS, NUM_F_MAPS, 1), jnp.float32)
    b1 = s * n(ks[5], (NUM_LAYERS, NUM_F_MAPS), jnp.float32)
    w_out = s * n(ks[6], (NUM_CLASSES - 1, NUM_F_MAPS, 1), jnp.float32)
    b_out = s * n(ks[7], (NUM_CLASSES - 1,), jnp.float32)
    w_bg = s * n(ks[8], (1, NUM_F_MAPS, 1), jnp.float32)
    b_bg = s * n(ks[9], (1,), jnp.float32)
    w_time = s * n(ks[10], (1, NUM_F_MAPS, 1), jnp.float32)
    b_time = s * n(ks[11], (1,), jnp.float32)
    return (w_in, b_in, wd, bd, w1, b1, w_out, b_out, w_bg, b_bg, w_time, b_time)


if __name__ == "__main__":
    key = jax.random.PRNGKey(0)
    k_x, k_p = jax.random.split(key, 2)

    x = jax.random.normal(k_x, (B, DIM, T), jnp.float32)          # PyTorch NCT layout
    # mask as in MS-TCN: (B, num_classes, T) of 0/1, valid prefix per sequence
    lengths = jnp.array([T, T - 5], dtype=jnp.int32)
    t_idx = jnp.arange(T)[None, :]
    mask_1t = (t_idx < lengths[:, None]).astype(jnp.float32)      # (B, T)
    mask = jnp.broadcast_to(mask_1t[:, None, :], (B, NUM_CLASSES, T))

    params = init_params(k_p)
    packed = pack_params(params)          # one-time host-side packing (hoisted out of jit)

    fwd = jax.jit(single_stage_model_pallas)
    out = fwd(x, mask, packed)
    jax.block_until_ready(out)

    ref = single_stage_model_ref(x, mask, params)
    for name in ("out_bg", "out_class", "out_time"):
        assert out[name].shape == ref[name].shape, name
        assert jnp.allclose(out[name], ref[name], atol=1e-5, rtol=1e-5), name

    print("KERNEL_OK")
</pallas_src>

<mosaic_0001>
module attributes {stable_mosaic.version = 11 : i64} {
  func.func @_single_stage_kernel(%arg0: memref<2x8x16xf32, #tpu.memory_space<vmem>>, %arg1: memref<2x6x16xf32, #tpu.memory_space<vmem>>, %arg2: memref<232x16xf32, #tpu.memory_space<vmem>>, %arg3: memref<2x8x16xf32, #tpu.memory_space<vmem>>, %arg4: memref<16x44xf32, #tpu.memory_space<vmem>>) attributes {dimension_semantics = [], scalar_prefetch = 0 : i64, scratch_operands = 1 : i64, tpu.core_type = #tpu.core_type<tc>} {
    %cst = arith.constant 0.000000e+00 : f32
    %0 = vector.broadcast %cst : f32 to vector<16x44xf32>
    %c0 = arith.constant 0 : index
    %c0_0 = arith.constant 0 : index
    %1 = vector.load %arg4[%c0, %c0_0] : memref<16x44xf32, #tpu.memory_space<vmem>>, vector<16x44xf32>
    tpu.vector_store %arg4[%c0, %c0_0], %0 {strides = array<i32>} : memref<16x44xf32, #tpu.memory_space<vmem>>, vector<16x44xf32>,
    %c216 = arith.constant 216 : index
    %c0_1 = arith.constant 0 : index
    %2 = vector.load %arg2[%c216, %c0_1] : memref<232x16xf32, #tpu.memory_space<vmem>>, vector<16x16xf32>
    %3 = vector.extract_strided_slice %2 {offsets = [0, 0], sizes = [16, 1], strides = [1, 1]} : vector<16x16xf32> to vector<16x1xf32>
    %c0_2 = arith.constant 0 : index
    %c0_3 = arith.constant 0 : index
    %4 = vector.load %arg2[%c0_2, %c0_3] : memref<232x16xf32, #tpu.memory_space<vmem>>, vector<16x8xf32>
    %c0_4 = arith.constant 0 : index
    %c0_5 = arith.constant 0 : index
    %c0_6 = arith.constant 0 : index
    %5 = vector.load %arg0[%c0_4, %c0_5, %c0_6] : memref<2x8x16xf32, #tpu.memory_space<vmem>>, vector<1x8x16xf32>
    %6 = vector.shape_cast %5 : vector<1x8x16xf32> to vector<8x16xf32>
    %cst_7 = arith.constant dense<0.000000e+00> : vector<16x16xf32>
    %7 = tpu.matmul %4, %6, %cst_7 {dimension_numbers = #tpu.dot_dimension_numbers<[1], [0], [0], [1], [0, 0, 1, 1], [], []>} : vector<16x8xf32>, vector<8x16xf32>, vector<16x16xf32> -> vector<16x16xf32>
    %8 = vector.broadcast %3 : vector<16x1xf32> to vector<16x16xf32>
    %9 = arith.addf %7, %8 : vector<16x16xf32>
    %c0_8 = arith.constant 0 : index
    %c4 = arith.constant 4 : index
    %10 = vector.load %arg4[%c0_8, %c4] : memref<16x44xf32, #tpu.memory_space<vmem>>, vector<16x16xf32>
    tpu.vector_store %arg4[%c0_8, %c4], %9 {strides = array<i32>} : memref<16x44xf32, #tpu.memory_space<vmem>>, vector<16x16xf32>,
    %c1 = arith.constant 1 : index
    %c0_9 = arith.constant 0 : index
    %c0_10 = arith.constant 0 : index
    %11 = vector.load %arg0[%c1, %c0_9, %c0_10] : memref<2x8x16xf32, #tpu.memory_space<vmem>>, vector<1x8x16xf32>
    %12 = vector.shape_cast %11 : vector<1x8x16xf32> to vector<8x16xf32>
    %cst_11 = arith.constant dense<0.000000e+00> : vector<16x16xf32>
    %13 = tpu.matmul %4, %12, %cst_11 {dimension_numbers = #tpu.dot_dimension_numbers<[1], [0], [0], [1], [0, 0, 1, 1], [], []>} : vector<16x8xf32>, vector<8x16xf32>, vector<16x16xf32> -> vector<16x16xf32>
    %14 = vector.broadcast %3 : vector<16x1xf32> to vector<16x16xf32>
    %15 = arith.addf %13, %14 : vector<16x16xf32>
    %c0_12 = arith.constant 0 : index
    %c24 = arith.constant 24 : index
    %16 = vector.load %arg4[%c0_12, %c24] : memref<16x44xf32, #tpu.memory_space<vmem>>, vector<16x16xf32>
    tpu.vector_store %arg4[%c0_12, %c24], %15 {strides = array<i32>} : memref<16x44xf32, #tpu.memory_space<vmem>>, vector<16x16xf32>,
    %c0_13 = arith.constant 0 : index
    %c4_14 = arith.constant 4 : index
    %17 = vector.load %arg4[%c0_13, %c4_14] : memref<16x44xf32, #tpu.memory_space<vmem>>, vector<16x36xf32>
    %c0_15 = arith.constant 0 : index
    %c0_16 = arith.constant 0 : index
    %c0_17 = arith.constant 0 : index
    %18 = vector.load %arg1[%c0_15, %c0_16, %c0_17] : memref<2x6x16xf32, #tpu.memory_space<vmem>>, vector<1x1x16xf32>
    %19 = vector.shape_cast %18 : vector<1x1x16xf32> to vector<1x16xf32>
    %cst_18 = arith.constant 0.000000e+00 : f32
    %20 = vector.broadcast %cst_18 : f32 to vector<1x4xf32>
    %c1_19 = arith.constant 1 : index
    %c0_20 = arith.constant 0 : index
    %c0_21 = arith.constant 0 : index
    %21 = vector.load %arg1[%c1_19, %c0_20, %c0_21] : memref<2x6x16xf32, #tpu.memory_space<vmem>>, vector<1x1x16xf32>
    %22 = vector.shape_cast %21 : vector<1x1x16xf32> to vector<1x16xf32>
    %23 = tpu.concatenate %19, %20, %22 in 1 : vector<1x16xf32>, vector<1x4xf32>, vector<1x16xf32> -> vector<1x36xf32>
    %24 = vector.shape_cast %23 : vector<1x36xf32> to vector<1x36xf32>
    %25 = vector.broadcast %24 : vector<1x36xf32> to vector<16x36xf32>
    %c0_22 = arith.constant 0 : index
    %c3 = arith.constant 3 : index
    %26 = vector.load %arg4[%c0_22, %c3] : memref<16x44xf32, #tpu.memory_space<vmem>>, vector<16x36xf32>
    %c0_23 = arith.constant 0 : index
    %c5 = arith.constant 5 : index
    %27 = vector.load %arg4[%c0_23, %c5] : memref<16x44xf32, #tpu.memory_space<vmem>>, vector<16x36xf32>
    %c16 = arith.constant 16 : index
    %c0_24 = arith.constant 0 : index
    %28 = vector.load %arg2[%c16, %c0_24] : memref<232x16xf32, #tpu.memory_space<vmem>>, vector<16x16xf32>
    %c32 = arith.constant 32 : index
    %c0_25 = arith.constant 0 : index
    %29 = vector.load %arg2[%c32, %c0_25] : memref<232x16xf32, #tpu.memory_space<vmem>>, vector<16x16xf32>
    %c48 = arith.constant 48 : index
    %c0_26 = arith.constant 0 : index
    %30 = vector.load %arg2[%c48, %c0_26] : memref<232x16xf32, #tpu.memory_space<vmem>>, vector<16x16xf32>
    %c64 = arith.constant 64 : index
    %c0_27 = arith.constant 0 : index
    %31 = vector.load %arg2[%c64, %c0_27] : memref<232x16xf32, #tpu.memory_space<vmem>>, vector<16x16xf32>
    %cst_28 = arith.constant dense<0.000000e+00> : vector<16x36xf32>
    %32 = tpu.matmul %28, %26, %cst_28 {dimension_numbers = #tpu.dot_dimension_numbers<[1], [0], [0], [1], [0, 0, 1, 1], [], []>} : vector<16x16xf32>, vector<16x36xf32>, vector<16x36xf32> -> vector<16x36xf32>
    %cst_29 = arith.constant dense<0.000000e+00> : vector<16x36xf32>
    %33 = tpu.matmul %29, %17, %cst_29 {dimension_numbers = #tpu.dot_dimension_numbers<[1], [0], [0], [1], [0, 0, 1, 1], [], []>} : vector<16x16xf32>, vector<16x36xf32>, vector<16x36xf32> -> vector<16x36xf32>
    %34 = arith.addf %32, %33 : vector<16x36xf32>
    %cst_30 = arith.constant dense<0.000000e+00> : vector<16x36xf32>
    %35 = tpu.matmul %30, %27, %cst_30 {dimension_numbers = #tpu.dot_dimension_numbers<[1], [0], [0], [1], [0, 0, 1, 1], [], []>} : vector<16x16xf32>, vector<16x36xf32>, vector<16x36xf32> -> vector<16x36xf32>
    %36 = arith.addf %34, %35 : vector<16x36xf32>
    %37 = vector.extract_strided_slice %2 {offsets = [0, 1], sizes = [16, 1], strides = [1, 1]} : vector<16x16xf32> to vector<16x1xf32>
    %38 = vector.broadcast %37 : vector<16x1xf32> to vector<16x36xf32>
    %39 = arith.addf %36, %38 : vector<16x36xf32>
    %cst_31 = arith.constant 0.000000e+00 : f32
    %40 = vector.broadcast %cst_31 : f32 to vector<16x36xf32>
    %41 = arith.maximumf %39, %40 : vector<16x36xf32>
    %cst_32 = arith.constant dense<0.000000e+00> : vector<16x36xf32>
    %42 = tpu.matmul %31, %41, %cst_32 {dimension_numbers = #tpu.dot_dimension_numbers<[1], [0], [0], [1], [0, 0, 1, 1], [], []>} : vector<16x16xf32>, vector<16x36xf32>, vector<16x36xf32> -> vector<16x36xf32>
    %43 = vector.extract_strided_slice %2 {offsets = [0, 2], sizes = [16, 1], strides = [1, 1]} : vector<16x16xf32> to vector<16x1xf32>
    %44 = vector.broadcast %43 : vector<16x1xf32> to vector<16x36xf32>
    %45 = arith.addf %42, %44 : vector<16x36xf32>
    %46 = arith.addf %17, %45 : vector<16x36xf32>
    %47 = arith.mulf %46, %25 : vector<16x36xf32>
    %c0_33 = arith.constant 0 : index
    %c4_34 = arith.constant 4 : index
    %48 = vector.load %arg4[%c0_33, %c4_34] : memref<16x44xf32, #tpu.memory_space<vmem>>, vector<16x36xf32>
    tpu.vector_store %arg4[%c0_33, %c4_34], %47 {strides = array<i32>} : memref<16x44xf32, #tpu.memory_space<vmem>>, vector<16x36xf32>,
    %c0_35 = arith.constant 0 : index
    %c2 = arith.constant 2 : index
    %49 = vector.load %arg4[%c0_35, %c2] : memref<16x44xf32, #tpu.memory_space<vmem>>, vector<16x36xf32>
    %c0_36 = arith.constant 0 : index
    %c6 = arith.constant 6 : index
    %50 = vector.load %arg4[%c0_36, %c6] : memref<16x44xf32, #tpu.memory_space<vmem>>, vector<16x36xf32>
    %c80 = arith.constant 80 : index
    %c0_37 = arith.constant 0 : index
    %51 = vector.load %arg2[%c80, %c0_37] : memref<232x16xf32, #tpu.memory_space<vmem>>, vector<16x16xf32>
    %c96 = arith.constant 96 : index
    %c0_38 = arith.constant 0 : index
    %52 = vector.load %arg2[%c96, %c0_38] : memref<232x16xf32, #tpu.memory_space<vmem>>, vector<16x16xf32>
    %c112 = arith.constant 112 : index
    %c0_39 = arith.constant 0 : index
    %53 = vector.load %arg2[%c112, %c0_39] : memref<232x16xf32, #tpu.memory_space<vmem>>, vector<16x16xf32>
    %c128 = arith.constant 128 : index
    %c0_40 = arith.constant 0 : index
    %54 = vector.load %arg2[%c128, %c0_40] : memref<232x16xf32, #tpu.memory_space<vmem>>, vector<16x16xf32>
    %cst_41 = arith.constant dense<0.000000e+00> : vector<16x36xf32>
    %55 = tpu.matmul %51, %49, %cst_41 {dimension_numbers = #tpu.dot_dimension_numbers<[1], [0], [0], [1], [0, 0, 1, 1], [], []>} : vector<16x16xf32>, vector<16x36xf32>, vector<16x36xf32> -> vector<16x36xf32>
    %cst_42 = arith.constant dense<0.000000e+00> : vector<16x36xf32>
    %56 = tpu.matmul %52, %47, %cst_42 {dimension_numbers = #tpu.dot_dimension_numbers<[1], [0], [0], [1], [0, 0, 1, 1], [], []>} : vector<16x16xf32>, vector<16x36xf32>, vector<16x36xf32> -> vector<16x36xf32>
    %57 = arith.addf %55, %56 : vector<16x36xf32>
    %cst_43 = arith.constant dense<0.000000e+00> : vector<16x36xf32>
    %58 = tpu.matmul %53, %50, %cst_43 {dimension_numbers = #tpu.dot_dimension_numbers<[1], [0], [0], [1], [0, 0, 1, 1], [], []>} : vector<16x16xf32>, vector<16x36xf32>, vector<16x36xf32> -> vector<16x36xf32>
    %59 = arith.addf %57, %58 : vector<16x36xf32>
    %60 = vector.extract_strided_slice %2 {offsets = [0, 3], sizes = [16, 1], strides = [1, 1]} : vector<16x16xf32> to vector<16x1xf32>
    %61 = vector.broadcast %60 : vector<16x1xf32> to vector<16x36xf32>
    %62 = arith.addf %59, %61 : vector<16x36xf32>
    %cst_44 = arith.constant 0.000000e+00 : f32
    %63 = vector.broadcast %cst_44 : f32 to vector<16x36xf32>
    %64 = arith.maximumf %62, %63 : vector<16x36xf32>
    %cst_45 = arith.constant dense<0.000000e+00> : vector<16x36xf32>
    %65 = tpu.matmul %54, %64, %cst_45 {dimension_numbers = #tpu.dot_dimension_numbers<[1], [0], [0], [1], [0, 0, 1, 1], [], []>} : vector<16x16xf32>, vector<16x36xf32>, vector<16x36xf32> -> vector<16x36xf32>
    %66 = vector.extract_strided_slice %2 {offsets = [0, 4], sizes = [16, 1], strides = [1, 1]} : vector<16x16xf32> to vector<16x1xf32>
    %67 = vector.broadcast %66 : vector<16x1xf32> to vector<16x36xf32>
    %68 = arith.addf %65, %67 : vector<16x36xf32>
    %69 = arith.addf %47, %68 : vector<16x36xf32>
    %70 = arith.mulf %69, %25 : vector<16x36xf32>
    %c0_46 = arith.constant 0 : index
    %c4_47 = arith.constant 4 : index
    %71 = vector.load %arg4[%c0_46, %c4_47] : memref<16x44xf32, #tpu.memory_space<vmem>>, vector<16x36xf32>
    tpu.vector_store %arg4[%c0_46, %c4_47], %70 {strides = array<i32>} : memref<16x44xf32, #tpu.memory_space<vmem>>, vector<16x36xf32>,
    %c0_48 = arith.constant 0 : index
    %c0_49 = arith.constant 0 : index
    %72 = vector.load %arg4[%c0_48, %c0_49] : memref<16x44xf32, #tpu.memory_space<vmem>>, vector<16x36xf32>
    %c0_50 = arith.constant 0 : index
    %c8 = arith.constant 8 : index
    %73 = vector.load %arg4[%c0_50, %c8] : memref<16x44xf32, #tpu.memory_space<vmem>>, vector<16x36xf32>
    %c144 = arith.constant 144 : index
    %c0_51 = arith.constant 0 : index
    %74 = vector.load %arg2[%c144, %c0_51] : memref<232x16xf32, #tpu.memory_space<vmem>>, vector<16x16xf32>
    %c160 = arith.constant 160 : index
    %c0_52 = arith.constant 0 : index
    %75 = vector.load %arg2[%c160, %c0_52] : memref<232x16xf32, #tpu.memory_space<vmem>>, vector<16x16xf32>
    %c176 = arith.constant 176 : index
    %c0_53 = arith.constant 0 : index
    %76 = vector.load %arg2[%c176, %c0_53] : memref<232x16xf32, #tpu.memory_space<vmem>>, vector<16x16xf32>
    %c192 = arith.constant 192 : index
    %c0_54 = arith.constant 0 : index
    %77 = vector.load %arg2[%c192, %c0_54] : memref<232x16xf32, #tpu.memory_space<vmem>>, vector<16x16xf32>
    %cst_55 = arith.constant dense<0.000000e+00> : vector<16x36xf32>
    %78 = tpu.matmul %74, %72, %cst_55 {dimension_numbers = #tpu.dot_dimension_numbers<[1], [0], [0], [1], [0, 0, 1, 1], [], []>} : vector<16x16xf32>, vector<16x36xf32>, vector<16x36xf32> -> vector<16x36xf32>
    %cst_56 = arith.constant dense<0.000000e+00> : vector<16x36xf32>
    %79 = tpu.matmul %75, %70, %cst_56 {dimension_numbers = #tpu.dot_dimension_numbers<[1], [0], [0], [1], [0, 0, 1, 1], [], []>} : vector<16x16xf32>, vector<16x36xf32>, vector<16x36xf32> -> vector<16x36xf32>
    %80 = arith.addf %78, %79 : vector<16x36xf32>
    %cst_57 = arith.constant dense<0.000000e+00> : vector<16x36xf32>
    %81 = tpu.matmul %76, %73, %cst_57 {dimension_numbers = #tpu.dot_dimension_numbers<[1], [0], [0], [1], [0, 0, 1, 1], [], []>} : vector<16x16xf32>, vector<16x36xf32>, vector<16x36xf32> -> vector<16x36xf32>
    %82 = arith.addf %80, %81 : vector<16x36xf32>
    %83 = vector.extract_strided_slice %2 {offsets = [0, 5], sizes = [16, 1], strides = [1, 1]} : vector<16x16xf32> to vector<16x1xf32>
    %84 = vector.broadcast %83 : vector<16x1xf32> to vector<16x36xf32>
    %85 = arith.addf %82, %84 : vector<16x36xf32>
    %cst_58 = arith.constant 0.000000e+00 : f32
    %86 = vector.broadcast %cst_58 : f32 to vector<16x36xf32>
    %87 = arith.maximumf %85, %86 : vector<16x36xf32>
    %cst_59 = arith.constant dense<0.000000e+00> : vector<16x36xf32>
    %88 = tpu.matmul %77, %87, %cst_59 {dimension_numbers = #tpu.dot_dimension_numbers<[1], [0], [0], [1], [0, 0, 1, 1], [], []>} : vector<16x16xf32>, vector<16x36xf32>, vector<16x36xf32> -> vector<16x36xf32>
    %89 = vector.extract_strided_slice %2 {offsets = [0, 6], sizes = [16, 1], strides = [1, 1]} : vector<16x16xf32> to vector<16x1xf32>
    %90 = vector.broadcast %89 : vector<16x1xf32> to vector<16x36xf32>
    %91 = arith.addf %88, %90 : vector<16x36xf32>
    %92 = arith.addf %70, %91 : vector<16x36xf32>
    %93 = arith.mulf %92, %25 : vector<16x36xf32>
    %c208 = arith.constant 208 : index
    %c0_60 = arith.constant 0 : index
    %94 = vector.load %arg2[%c208, %c0_60] : memref<232x16xf32, #tpu.memory_space<vmem>>, vector<8x16xf32>
    %95 = vector.extract_strided_slice %2 {offsets = [0, 7], sizes = [8, 1], strides = [1, 1]} : vector<16x16xf32> to vector<8x1xf32>
    %cst_61 = arith.constant dense<0.000000e+00> : vector<8x36xf32>
    %96 = tpu.matmul %94, %93, %cst_61 {dimension_numbers = #tpu.dot_dimension_numbers<[1], [0], [0], [1], [0, 0, 1, 1], [], []>} : vector<8x16xf32>, vector<16x36xf32>, vector<8x36xf32> -> vector<8x36xf32>
    %97 = vector.broadcast %95 : vector<8x1xf32> to vector<8x36xf32>
    %98 = arith.addf %96, %97 : vector<8x36xf32>
    %99 = vector.broadcast %23 : vector<1x36xf32> to vector<8x36xf32>
    %100 = arith.mulf %98, %99 : vector<8x36xf32>
    %101 = vector.extract_strided_slice %100 {offsets = [0, 0], sizes = [8, 16], strides = [1, 1]} : vector<8x36xf32> to vector<8x16xf32>
    %c0_62 = arith.constant 0 : index
    %c0_63 = arith.constant 0 : index
    %c0_64 = arith.constant 0 : index
    %102 = vector.load %arg3[%c0_62, %c0_63, %c0_64] : memref<2x8x16xf32, #tpu.memory_space<vmem>>, vector<1x8x16xf32>
    %103 = vector.shape_cast %102 : vector<1x8x16xf32> to vector<8x16xf32>
    %104 = vector.shape_cast %101 : vector<8x16xf32> to vector<1x8x16xf32>
    tpu.vector_store %arg3[%c0_62, %c0_63, %c0_64], %104 {strides = array<i32>} : memref<2x8x16xf32, #tpu.memory_space<vmem>>, vector<1x8x16xf32>,
    %105 = vector.extract_strided_slice %100 {offsets = [0, 20], sizes = [8, 16], strides = [1, 1]} : vector<8x36xf32> to vector<8x16xf32>
    %c1_65 = arith.constant 1 : index
    %c0_66 = arith.constant 0 : index
    %c0_67 = arith.constant 0 : index
    %106 = vector.load %arg3[%c1_65, %c0_66, %c0_67] : memref<2x8x16xf32, #tpu.memory_space<vmem>>, vector<1x8x16xf32>
    %107 = vector.shape_cast %106 : vector<1x8x16xf32> to vector<8x16xf32>
    %108 = vector.shape_cast %105 : vector<8x16xf32> to vector<1x8x16xf32>
    tpu.vector_store %arg3[%c1_65, %c0_66, %c0_67], %108 {strides = array<i32>} : memref<2x8x16xf32, #tpu.memory_space<vmem>>, vector<1x8x16xf32>,
    return
  }
}

</mosaic_0001>

<llo_original>
// kernel: single_stage_model_pallas.1
$region0: #{single_stage_model_pallas.1}
  #allocation0 [shape = 'u32[]', space=smem, size = 0x4, offset = 0x4, fixed_abs, tag = 'smem constant byte address 0x4 - core index']
  #allocation1 [shape = 'u32[144,128]{1,0:T(1,128)}', space=vmem, size = 0x12000, scoped, tag = 'internal scratch']
  #allocation2 [shape = 'f32[16,44]{1,0:T(8,128)}', space=vmem, size = 0x2000, scoped, tag = 'scratch operand']
  %s0 = inlined_call_operand.vmem [shape: f32[2,8,16], index: 0, kind: input, shape index: {}]
  %s1 = inlined_call_operand.vmem [shape: f32[2,6,16], index: 1, kind: input, shape index: {}]
  %s2 = inlined_call_operand.vmem [shape: f32[232,16], index: 2, kind: input, shape index: {}]
  %s3 = inlined_call_operand.vmem [shape: f32[2,8,16], index: 3, kind: output, shape index: {}]
  %s4 = sld [smem:[#allocation0]]
  $region22: #{single_stage_model_pallas.1} parent=0
    _
  %s6 = ssub.s32 1, %s4
  %s7 = scalar_select 0, %s6, %s4
  // Predicated region
  $region2: #{single_stage_model_pallas.1} parent=0 // pred_check
    _
  $region3: #{single_stage_model_pallas.1} parent=0 // pred_check_branch
    %9 = sbr.rel (0) target = $region5
  $region4: #{single_stage_model_pallas.1} parent=0 // pred_region
    _
  $region5: #{single_stage_model_pallas.1} parent=0 // pred_fallthru
    _
  // Predicated region
  $region6: #{single_stage_model_pallas.1} parent=0 // pred_check
    _
  $region7: #{single_stage_model_pallas.1} parent=0 // pred_check_branch
    %11 = sbr.rel (0) target = $region9
  $region8: #{single_stage_model_pallas.1} parent=0 // pred_region
    _
  $region9: #{single_stage_model_pallas.1} parent=0 // pred_fallthru
    _
  // Predicated region
  $region10: #{single_stage_model_pallas.1} parent=0 // pred_check
    _
  $region11: #{single_stage_model_pallas.1} parent=0 // pred_check_branch
    %13 = sbr.rel (0) target = $region13
  $region12: #{single_stage_model_pallas.1} parent=0 // pred_region
    _
  $region13: #{single_stage_model_pallas.1} parent=0 // pred_fallthru
    _
  %vm14 = vcmask 359424
  %15 = vst.msk [vmem:[#allocation2] sm:$0xff] %vm14, 0.0
  %16 = vst.msk [vmem:[#allocation2 + $0x8] sm:$0xff] %vm14, 0.0
  %v17 = vld [vmem:[%s2 + $0xd8] sm:$0xff]
  %v18 = vld [vmem:[%s2 + $0xe0] sm:$0xff]
  %v19 = vld [vmem:[%s2] sm:$0xff]
  %v20 = vld [vmem:[%s2 + $0x8] sm:$0xff]
  %v21 = vld [vmem:[%s0] sm:$0xff]
  %23 = vset.pattern.permute.xlu0 0
  %24 = vperm.xlu0 %23, %v17
  %v25 = vpop.permute.xlu0 %24
  %28 = vset.pattern.permute.xlu0 0
  %29 = vperm.xlu0 %28, %v18
  %v30 = vpop.permute.xlu0 %29
  %vm32 = vcmask 64512
  %v34 = vsel %vm32, %v19, 0
  %v37 = vsel %vm32, %v20, 0
  %39 = vmatprep.subr.mxu0 0.0
  %40 = vmatpush1.msra.mxu0 %v21
  %41 = vmatprep.subr.mxu0 0.0
  %42 = vmatpush1.msra.mxu0 0.0
  %43 = vmatprep.subr.mxu0 0.0
  %44 = vmatpush1.msra.mxu0 0.0
  %45 = vmatprep.subr.mxu0 0.0
  %46 = vmatpush1.msra.mxu0 0.0
  %47 = vmatprep.subr.mxu0 0.0
  %48 = vmatpush1.msra.mxu0 0.0
  %49 = vmatprep.subr.mxu0 0.0
  %50 = vmatpush1.msra.mxu0 0.0
  %51 = vmatprep.subr.mxu0 0.0
  %52 = vmatpush1.msra.mxu0 0.0
  %53 = vmatprep.subr.mxu0 0.0
  %54 = vmatpush1.msra.mxu0 0.0
  %55 = vmatprep.subr.mxu0 0.0
  %56 = vmatpush1.msra.mxu0 0.0
  %57 = vmatprep.subr.mxu0 0.0
  %58 = vmatpush1.msra.mxu0 0.0
  %59 = vmatprep.subr.mxu0 0.0
  %60 = vmatpush1.msra.mxu0 0.0
  %61 = vmatprep.subr.mxu0 0.0
  %62 = vmatpush1.msra.mxu0 0.0
  %63 = vmatprep.subr.mxu0 0.0
  %64 = vmatpush1.msra.mxu0 0.0
  %65 = vmatprep.subr.mxu0 0.0
  %66 = vmatpush1.msra.mxu0 0.0
  %67 = vmatprep.subr.mxu0 0.0
  %68 = vmatpush1.msra.mxu0 0.0
  %69 = vmatprep.subr.mxu0 0.0
  %70 = vmatpush1.msra.mxu0 0.0
  %71 = vmatprep.subr.mxu0 0.0
  %72 = vmatpush1.msra.mxu0 0.0
  %73 = vmatprep.subr.mxu0 0.0
  %74 = vmatpush1.msra.mxu0 0.0
  %75 = vmatprep.subr.mxu0 0.0
  %76 = vmatpush1.msra.mxu0 0.0
  %77 = vmatprep.subr.mxu0 0.0
  %78 = vmatpush1.msra.mxu0 0.0
  %79 = vmatprep.subr.mxu0 0.0
  %80 = vmatpush1.msra.mxu0 0.0
  %81 = vmatprep.subr.mxu0 0.0
  %82 = vmatpush1.msra.mxu0 0.0
  %83 = vmatprep.subr.mxu0 0.0
  %84 = vmatpush1.msra.mxu0 0.0
  %85 = vmatprep.subr.mxu0 0.0
  %86 = vmatpush1.msra.mxu0 0.0
  %87 = vmatprep.subr.mxu0 0.0
  %88 = vmatpush1.msra.mxu0 0.0
  %89 = vmatprep.subr.mxu0 0.0
  %90 = vmatpush1.msra.mxu0 0.0
  %91 = vmatprep.subr.mxu0 0.0
  %92 = vmatpush1.msra.mxu0 0.0
  %93 = vmatprep.subr.mxu0 0.0
  %94 = vmatpush1.msra.mxu0 0.0
  %95 = vmatprep.subr.mxu0 0.0
  %96 = vmatpush1.msra.mxu0 0.0
  %97 = vmatprep.subr.mxu0 0.0
  %98 = vmatpush1.msra.mxu0 0.0
  %99 = vmatprep.subr.mxu0 0.0
  %100 = vmatpush1.msra.mxu0 0.0
  %101 = vmatprep.subr.mxu0 0.0
  %102 = vmatpush1.msra.mxu0 0.0
  %103 = vmatprep.mubr.f32.mxu0 0.0
  %104 = vmatmul.mubr.f32.gmra.mrb[0].mxu0 %v34
  %v105 = vpop.f32.mrb[0].mxu0
  %v106 = vadd.f32 %v25, %v105
  %v107 = vpop.f32.mrb[0].mxu0
  %108 = vmatprep.mubr.f32.mxu0 0.0
  %109 = vmatmul.mubr.f32.gmra.mrb[0].mxu0 %v37
  %v110 = vpop.f32.mrb[0].mxu0
  %v111 = vadd.f32 %v30, %v110
  %v112 = vpop.f32.mrb[0].mxu0
  %113 = vdwg.mxu0
  %116 = vrot.lane.b32.xlu0 %v106, 4
  %v117 = vpop.permute.xlu0 %116
  %118 = vrot.lane.b32.xlu0 %v111, 4
  %v119 = vpop.permute.xlu0 %118
  %vm122 = vcmask 162848
  %123 = vst.msk [vmem:[#allocation2] sm:$0xff] %vm122, %v117
  %124 = vst.msk [vmem:[#allocation2 + $0x8] sm:$0xff] %vm122, %v119
  %s125 = scalar_lea.vmem %s0, 8
  %v126 = vld [vmem:[%s125] sm:$0xff]
  %127 = vmatprep.subr.mxu0 0.0
  %128 = vmatpush1.msra.mxu0 %v126
  %129 = vmatprep.subr.mxu0 0.0
  %130 = vmatpush1.msra.mxu0 0.0
  %131 = vmatprep.subr.mxu0 0.0
  %132 = vmatpush1.msra.mxu0 0.0
  %133 = vmatprep.subr.mxu0 0.0
  %134 = vmatpush1.msra.mxu0 0.0
  %135 = vmatprep.subr.mxu0 0.0
  %136 = vmatpush1.msra.mxu0 0.0
  %137 = vmatprep.subr.mxu0 0.0
  %138 = vmatpush1.msra.mxu0 0.0
  %139 = vmatprep.subr.mxu0 0.0
  %140 = vmatpush1.msra.mxu0 0.0
  %141 = vmatprep.subr.mxu0 0.0
  %142 = vmatpush1.msra.mxu0 0.0
  %143 = vmatprep.subr.mxu0 0.0
  %144 = vmatpush1.msra.mxu0 0.0
  %145 = vmatprep.subr.mxu0 0.0
  %146 = vmatpush1.msra.mxu0 0.0
  %147 = vmatprep.subr.mxu0 0.0
  %148 = vmatpush1.msra.mxu0 0.0
  %149 = vmatprep.subr.mxu0 0.0
  %150 = vmatpush1.msra.mxu0 0.0
  %151 = vmatprep.subr.mxu0 0.0
  %152 = vmatpush1.msra.mxu0 0.0
  %153 = vmatprep.subr.mxu0 0.0
  %154 = vmatpush1.msra.mxu0 0.0
  %155 = vmatprep.subr.mxu0 0.0
  %156 = vmatpush1.msra.mxu0 0.0
  %157 = vmatprep.subr.mxu0 0.0
  %158 = vmatpush1.msra.mxu0 0.0
  %159 = vmatprep.subr.mxu0 0.0
  %160 = vmatpush1.msra.mxu0 0.0
  %161 = vmatprep.subr.mxu0 0.0
  %162 = vmatpush1.msra.mxu0 0.0
  %163 = vmatprep.subr.mxu0 0.0
  %164 = vmatpush1.msra.mxu0 0.0
  %165 = vmatprep.subr.mxu0 0.0
  %166 = vmatpush1.msra.mxu0 0.0
  %167 = vmatprep.subr.mxu0 0.0
  %168 = vmatpush1.msra.mxu0 0.0
  %169 = vmatprep.subr.mxu0 0.0
  %170 = vmatpush1.msra.mxu0 0.0
  %171 = vmatprep.subr.mxu0 0.0
  %172 = vmatpush1.msra.mxu0 0.0
  %173 = vmatprep.subr.mxu0 0.0
  %174 = vmatpush1.msra.mxu0 0.0
  %175 = vmatprep.subr.mxu0 0.0
  %176 = vmatpush1.msra.mxu0 0.0
  %177 = vmatprep.subr.mxu0 0.0
  %178 = vmatpush1.msra.mxu0 0.0
  %179 = vmatprep.subr.mxu0 0.0
  %180 = vmatpush1.msra.mxu0 0.0
  %181 = vmatprep.subr.mxu0 0.0
  %182 = vmatpush1.msra.mxu0 0.0
  %183 = vmatprep.subr.mxu0 0.0
  %184 = vmatpush1.msra.mxu0 0.0
  %185 = vmatprep.subr.mxu0 0.0
  %186 = vmatpush1.msra.mxu0 0.0
  %187 = vmatprep.subr.mxu0 0.0
  %188 = vmatpush1.msra.mxu0 0.0
  %189 = vmatprep.subr.mxu0 0.0
  %190 = vmatpush1.msra.mxu0 0.0
  %191 = vmatprep.mubr.f32.mxu0 0.0
  %192 = vmatmul.mubr.f32.gmra.mrb[0].mxu0 %v34
  %v193 = vpop.f32.mrb[0].mxu0
  %v194 = vadd.f32 %v25, %v193
  %v195 = vpop.f32.mrb[0].mxu0
  %196 = vmatprep.mubr.f32.mxu0 0.0
  %197 = vmatmul.mubr.f32.gmra.mrb[0].mxu0 %v37
  %v198 = vpop.f32.mrb[0].mxu0
  %v199 = vadd.f32 %v30, %v198
  %v200 = vpop.f32.mrb[0].mxu0
  %201 = vdwg.mxu0
  %204 = vrot.lane.b32.xlu0 %v194, 24
  %v205 = vpop.permute.xlu0 %204
  %206 = vrot.lane.b32.xlu0 %v199, 24
  %v207 = vpop.permute.xlu0 %206
  %vm210 = vcmask 326848
  %211 = vst.msk [vmem:[#allocation2] sm:$0xff] %vm210, %v205
  %212 = vst.msk [vmem:[#allocation2 + $0x8] sm:$0xff] %vm210, %v207
  %v213 = vld [vmem:[#allocation2] sm:$0xff]
  %v214 = vld [vmem:[#allocation2 + $0x8] sm:$0xff]
  %v215 = vld [vmem:[%s1] sm:$0x1]
  %s216 = scalar_lea.vmem %s1, 8
  %v217 = vld [vmem:[%s216] sm:$0x1]
  %219 = vrot.lane.b32.xlu0 %v217, 20
  %v220 = vpop.permute.xlu0 %219
  %vm222 = vcmask 130048
  %v223 = vsel %vm222, %v215, 0.0
  %vm224 = vcmask 162816
  %v225 = vsel %vm224, %v223, %v220
  %v226 = vlaneseq
  %v227 = vshrl.u32 %v226, 7
  %v228 = vsub.s32 0, %v227
  %v229 = vrot.slane %v225, %v228
  %v230 = vld [vmem:[%s2 + $0x10] sm:$0xff]
  %v231 = vld [vmem:[%s2 + $0x18] sm:$0xff]
  %v232 = vld [vmem:[%s2 + $0x20] sm:$0xff]
  %v233 = vld [vmem:[%s2 + $0x28] sm:$0xff]
  %v234 = vld [vmem:[%s2 + $0x30] sm:$0xff]
  %v235 = vld [vmem:[%s2 + $0x38] sm:$0xff]
  %v236 = vld [vmem:[%s2 + $0x40] sm:$0xff]
  %v237 = vld [vmem:[%s2 + $0x48] sm:$0xff]
  %240 = vrot.lane.b32.xlu0 %v213, 124
  %v241 = vpop.permute.xlu0 %240
  %242 = vrot.lane.b32.xlu0 %v214, 124
  %v243 = vpop.permute.xlu0 %242
  %v247 = vsel %vm222, %v232, 0
  %v250 = vsel %vm222, %v233, 0
  %252 = vmatprep.subr.mxu0 0.0
  %253 = vmatpush1.msra.mxu0 %v241
  %254 = vmatprep.subr.mxu0 0.0
  %255 = vmatpush1.msra.mxu0 %v243
  %256 = vmatprep.subr.mxu0 0.0
  %257 = vmatpush1.msra.mxu0 0.0
  %258 = vmatprep.subr.mxu0 0.0
  %259 = vmatpush1.msra.mxu0 0.0
  %260 = vmatprep.subr.mxu0 0.0
  %261 = vmatpush1.msra.mxu0 0.0
  %262 = vmatprep.subr.mxu0 0.0
  %263 = vmatpush1.msra.mxu0 0.0
  %264 = vmatprep.subr.mxu0 0.0
  %265 = vmatpush1.msra.mxu0 0.0
  %266 = vmatprep.subr.mxu0 0.0
  %267 = vmatpush1.msra.mxu0 0.0
  %268 = vmatprep.subr.mxu0 0.0
  %269 = vmatpush1.msra.mxu0 0.0
  %270 = vmatprep.subr.mxu0 0.0
  %271 = vmatpush1.msra.mxu0 0.0
  %272 = vmatprep.subr.mxu0 0.0
  %273 = vmatpush1.msra.mxu0 0.0
  %274 = vmatprep.subr.mxu0 0.0
  %275 = vmatpush1.msra.mxu0 0.0
  %276 = vmatprep.subr.mxu0 0.0
  %277 = vmatpush1.msra.mxu0 0.0
  %278 = vmatprep.subr.mxu0 0.0
  %279 = vmatpush1.msra.mxu0 0.0
  %280 = vmatprep.subr.mxu0 0.0
  %281 = vmatpush1.msra.mxu0 0.0
  %282 = vmatprep.subr.mxu0 0.0
  %283 = vmatpush1.msra.mxu0 0.0
  %284 = vmatprep.subr.mxu0 0.0
  %285 = vmatpush1.msra.mxu0 0.0
  %286 = vmatprep.subr.mxu0 0.0
  %287 = vmatpush1.msra.mxu0 0.0
  %288 = vmatprep.subr.mxu0 0.0
  %289 = vmatpush1.msra.mxu0 0.0
  %290 = vmatprep.subr.mxu0 0.0
  %291 = vmatpush1.msra.mxu0 0.0
  %292 = vmatprep.subr.mxu0 0.0
  %293 = vmatpush1.msra.mxu0 0.0
  %294 = vmatprep.subr.mxu0 0.0
  %295 = vmatpush1.msra.mxu0 0.0
  %296 = vmatprep.subr.mxu0 0.0
  %297 = vmatpush1.msra.mxu0 0.0
  %298 = vmatprep.subr.mxu0 0.0
  %299 = vmatpush1.msra.mxu0 0.0
  %300 = vmatprep.subr.mxu0 0.0
  %301 = vmatpush1.msra.mxu0 0.0
  %302 = vmatprep.subr.mxu0 0.0
  %303 = vmatpush1.msra.mxu0 0.0
  %304 = vmatprep.subr.mxu0 0.0
  %305 = vmatpush1.msra.mxu0 0.0
  %306 = vmatprep.subr.mxu0 0.0
  %307 = vmatpush1.msra.mxu0 0.0
  %308 = vmatprep.subr.mxu0 0.0
  %309 = vmatpush1.msra.mxu0 0.0
  %310 = vmatprep.subr.mxu0 0.0
  %311 = vmatpush1.msra.mxu0 0.0
  %312 = vmatprep.subr.mxu0 0.0
  %313 = vmatpush1.msra.mxu0 0.0
  %314 = vmatprep.subr.mxu0 0.0
  %315 = vmatpush1.msra.mxu0 0.0
  %316 = vmatprep.mubr.f32.mxu0 0.0
  %317 = vmatmul.mubr.f32.gmra.mrb[0].mxu0 %v247
  %v318 = vpop.f32.mrb[0].mxu0
  %v319 = vadd.f32 0.0, %v318
  %v320 = vpop.f32.mrb[0].mxu0
  %321 = vmatprep.mubr.f32.mxu0 0.0
  %322 = vmatmul.mubr.f32.gmra.mrb[0].mxu0 %v250
  %v323 = vpop.f32.mrb[0].mxu0
  %v324 = vadd.f32 0.0, %v323
  %v325 = vpop.f32.mrb[0].mxu0
  %326 = vdwg.mxu0
  %327 = vrot.lane.b32.xlu0 %v213, 125
  %v328 = vpop.permute.xlu0 %327
  %329 = vrot.lane.b32.xlu0 %v214, 125
  %v330 = vpop.permute.xlu0 %329
  %v334 = vsel %vm222, %v230, 0
  %v337 = vsel %vm222, %v231, 0
  %339 = vmatprep.subr.mxu0 0.0
  %340 = vmatpush1.msra.mxu0 %v328
  %341 = vmatprep.subr.mxu0 0.0
  %342 = vmatpush1.msra.mxu0 %v330
  %343 = vmatprep.subr.mxu0 0.0
  %344 = vmatpush1.msra.mxu0 0.0
  %345 = vmatprep.subr.mxu0 0.0
  %346 = vmatpush1.msra.mxu0 0.0
  %347 = vmatprep.subr.mxu0 0.0
  %348 = vmatpush1.msra.mxu0 0.0
  %349 = vmatprep.subr.mxu0 0.0
  %350 = vmatpush1.msra.mxu0 0.0
  %351 = vmatprep.subr.mxu0 0.0
  %352 = vmatpush1.msra.mxu0 0.0
  %353 = vmatprep.subr.mxu0 0.0
  %354 = vmatpush1.msra.mxu0 0.0
  %355 = vmatprep.subr.mxu0 0.0
  %356 = vmatpush1.msra.mxu0 0.0
  %357 = vmatprep.subr.mxu0 0.0
  %358 = vmatpush1.msra.mxu0 0.0
  %359 = vmatprep.subr.mxu0 0.0
  %360 = vmatpush1.msra.mxu0 0.0
  %361 = vmatprep.subr.mxu0 0.0
  %362 = vmatpush1.msra.mxu0 0.0
  %363 = vmatprep.subr.mxu0 0.0
  %364 = vmatpush1.msra.mxu0 0.0
  %365 = vmatprep.subr.mxu0 0.0
  %366 = vmatpush1.msra.mxu0 0.0
  %367 = vmatprep.subr.mxu0 0.0
  %368 = vmatpush1.msra.mxu0 0.0
  %369 = vmatprep.subr.mxu0 0.0
  %370 = vmatpush1.msra.mxu0 0.0
  %371 = vmatprep.subr.mxu0 0.0
  %372 = vmatpush1.msra.mxu0 0.0
  %373 = vmatprep.subr.mxu0 0.0
  %374 = vmatpush1.msra.mxu0 0.0
  %375 = vmatprep.subr.mxu0 0.0
  %376 = vmatpush1.msra.mxu0 0.0
  %377 = vmatprep.subr.mxu0 0.0
  %378 = vmatpush1.msra.mxu0 0.0
  %379 = vmatprep.subr.mxu0 0.0
  %380 = vmatpush1.msra.mxu0 0.0
  %381 = vmatprep.subr.mxu0 0.0
  %382 = vmatpush1.msra.mxu0 0.0
  %383 = vmatprep.subr.mxu0 0.0
  %384 = vmatpush1.msra.mxu0 0.0
  %385 = vmatprep.subr.mxu0 0.0
  %386 = vmatpush1.msra.mxu0 0.0
  %387 = vmatprep.subr.mxu0 0.0
  %388 = vmatpush1.msra.mxu0 0.0
  %389 = vmatprep.subr.mxu0 0.0
  %390 = vmatpush1.msra.mxu0 0.0
  %391 = vmatprep.subr.mxu0 0.0
  %392 = vmatpush1.msra.mxu0 0.0
  %393 = vmatprep.subr.mxu0 0.0
  %394 = vmatpush1.msra.mxu0 0.0
  %395 = vmatprep.subr.mxu0 0.0
  %396 = vmatpush1.msra.mxu0 0.0
  %397 = vmatprep.subr.mxu0 0.0
  %398 = vmatpush1.msra.mxu0 0.0
  %399 = vmatprep.subr.mxu0 0.0
  %400 = vmatpush1.msra.mxu0 0.0
  %401 = vmatprep.subr.mxu0 0.0
  %402 = vmatpush1.msra.mxu0 0.0
  %403 = vmatprep.mubr.f32.mxu0 0.0
  %404 = vmatmul.mubr.f32.gmra.mrb[0].mxu0 %v334
  %v405 = vpop.f32.mrb[0].mxu0
  %v406 = vadd.f32 %v319, %v405
  %v407 = vpop.f32.mrb[0].mxu0
  %408 = vmatprep.mubr.f32.mxu0 0.0
  %409 = vmatmul.mubr.f32.gmra.mrb[0].mxu0 %v337
  %v410 = vpop.f32.mrb[0].mxu0
  %v411 = vadd.f32 %v324, %v410
  %v412 = vpop.f32.mrb[0].mxu0
  %413 = vdwg.mxu0
  %414 = vrot.lane.b32.xlu0 %v213, 123
  %v415 = vpop.permute.xlu0 %414
  %416 = vrot.lane.b32.xlu0 %v214, 123
  %v417 = vpop.permute.xlu0 %416
  %v421 = vsel %vm222, %v234, 0
  %v424 = vsel %vm222, %v235, 0
  %426 = vmatprep.subr.mxu0 0.0
  %427 = vmatpush1.msra.mxu0 %v415
  %428 = vmatprep.subr.mxu0 0.0
  %429 = vmatpush1.msra.mxu0 %v417
  %430 = vmatprep.subr.mxu0 0.0
  %431 = vmatpush1.msra.mxu0 0.0
  %432 = vmatprep.subr.mxu0 0.0
  %433 = vmatpush1.msra.mxu0 0.0
  %434 = vmatprep.subr.mxu0 0.0
  %435 = vmatpush1.msra.mxu0 0.0
  %436 = vmatprep.subr.mxu0 0.0
  %437 = vmatpush1.msra.mxu0 0.0
  %438 = vmatprep.subr.mxu0 0.0
  %439 = vmatpush1.msra.mxu0 0.0
  %440 = vmatprep.subr.mxu0 0.0
  %441 = vmatpush1.msra.mxu0 0.0
  %442 = vmatprep.subr.mxu0 0.0
  %443 = vmatpush1.msra.mxu0 0.0
  %444 = vmatprep.subr.mxu0 0.0
  %445 = vmatpush1.msra.mxu0 0.0
  %446 = vmatprep.subr.mxu0 0.0
  %447 = vmatpush1.msra.mxu0 0.0
  %448 = vmatprep.subr.mxu0 0.0
  %449 = vmatpush1.msra.mxu0 0.0
  %450 = vmatprep.subr.mxu0 0.0
  %451 = vmatpush1.msra.mxu0 0.0
  %452 = vmatprep.subr.mxu0 0.0
  %453 = vmatpush1.msra.mxu0 0.0
  %454 = vmatprep.subr.mxu0 0.0
  %455 = vmatpush1.msra.mxu0 0.0
  %456 = vmatprep.subr.mxu0 0.0
  %457 = vmatpush1.msra.mxu0 0.0
  %458 = vmatprep.subr.mxu0 0.0
  %459 = vmatpush1.msra.mxu0 0.0
  %460 = vmatprep.subr.mxu0 0.0
  %461 = vmatpush1.msra.mxu0 0.0
  %462 = vmatprep.subr.mxu0 0.0
  %463 = vmatpush1.msra.mxu0 0.0
  %464 = vmatprep.subr.mxu0 0.0
  %465 = vmatpush1.msra.mxu0 0.0
  %466 = vmatprep.subr.mxu0 0.0
  %467 = vmatpush1.msra.mxu0 0.0
  %468 = vmatprep.subr.mxu0 0.0
  %469 = vmatpush1.msra.mxu0 0.0
  %470 = vmatprep.subr.mxu0 0.0
  %471 = vmatpush1.msra.mxu0 0.0
  %472 = vmatprep.subr.mxu0 0.0
  %473 = vmatpush1.msra.mxu0 0.0
  %474 = vmatprep.subr.mxu0 0.0
  %475 = vmatpush1.msra.mxu0 0.0
  %476 = vmatprep.subr.mxu0 0.0
  %477 = vmatpush1.msra.mxu0 0.0
  %478 = vmatprep.subr.mxu0 0.0
  %479 = vmatpush1.msra.mxu0 0.0
  %480 = vmatprep.subr.mxu0 0.0
  %481 = vmatpush1.msra.mxu0 0.0
  %482 = vmatprep.subr.mxu0 0.0
  %483 = vmatpush1.msra.mxu0 0.0
  %484 = vmatprep.subr.mxu0 0.0
  %485 = vmatpush1.msra.mxu0 0.0
  %486 = vmatprep.subr.mxu0 0.0
  %487 = vmatpush1.msra.mxu0 0.0
  %488 = vmatprep.subr.mxu0 0.0
  %489 = vmatpush1.msra.mxu0 0.0
  %490 = vmatprep.mubr.f32.mxu0 0.0
  %491 = vmatmul.mubr.f32.gmra.mrb[0].mxu0 %v421
  %v492 = vpop.f32.mrb[0].mxu0
  %v493 = vadd.f32 0.0, %v492
  %v494 = vpop.f32.mrb[0].mxu0
  %495 = vmatprep.mubr.f32.mxu0 0.0
  %496 = vmatmul.mubr.f32.gmra.mrb[0].mxu0 %v424
  %v497 = vpop.f32.mrb[0].mxu0
  %v498 = vadd.f32 0.0, %v497
  %v499 = vpop.f32.mrb[0].mxu0
  %500 = vdwg.mxu0
  %v501 = vadd.f32 %v406, %v493
  %v502 = vadd.f32 %v411, %v498
  %503 = vset.pattern.permute.xlu0 1
  %504 = vperm.xlu0 %503, %v17
  %v505 = vpop.permute.xlu0 %504
  %507 = vset.pattern.permute.xlu0 1
  %508 = vperm.xlu0 %507, %v18
  %v509 = vpop.permute.xlu0 %508
  %v511 = vadd.f32 %v501, %v505
  %v512 = vadd.f32 %v502, %v509
  %v513 = vmax.f32 %v511, 0.0
  %v514 = vmax.f32 %v512, 0.0
  %515 = vset.pattern.permute.xlu0 2
  %516 = vperm.xlu0 %515, %v17
  %v517 = vpop.permute.xlu0 %516
  %519 = vset.pattern.permute.xlu0 2
  %520 = vperm.xlu0 %519, %v18
  %v521 = vpop.permute.xlu0 %520
  %v524 = vsel %vm222, %v236, 0
  %v527 = vsel %vm222, %v237, 0
  %529 = vmatprep.subr.mxu0 0.0
  %530 = vmatpush1.msra.mxu0 %v513
  %531 = vmatprep.subr.mxu0 0.0
  %532 = vmatpush1.msra.mxu0 %v514
  %533 = vmatprep.subr.mxu0 0.0
  %534 = vmatpush1.msra.mxu0 0.0
  %535 = vmatprep.subr.mxu0 0.0
  %536 = vmatpush1.msra.mxu0 0.0
  %537 = vmatprep.subr.mxu0 0.0
  %538 = vmatpush1.msra.mxu0 0.0
  %539 = vmatprep.subr.mxu0 0.0
  %540 = vmatpush1.msra.mxu0 0.0
  %541 = vmatprep.subr.mxu0 0.0
  %542 = vmatpush1.msra.mxu0 0.0
  %543 = vmatprep.subr.mxu0 0.0
  %544 = vmatpush1.msra.mxu0 0.0
  %545 = vmatprep.subr.mxu0 0.0
  %546 = vmatpush1.msra.mxu0 0.0
  %547 = vmatprep.subr.mxu0 0.0
  %548 = vmatpush1.msra.mxu0 0.0
  %549 = vmatprep.subr.mxu0 0.0
  %550 = vmatpush1.msra.mxu0 0.0
  %551 = vmatprep.subr.mxu0 0.0
  %552 = vmatpush1.msra.mxu0 0.0
  %553 = vmatprep.subr.mxu0 0.0
  %554 = vmatpush1.msra.mxu0 0.0
  %555 = vmatprep.subr.mxu0 0.0
  %556 = vmatpush1.msra.mxu0 0.0
  %557 = vmatprep.subr.mxu0 0.0
  %558 = vmatpush1.msra.mxu0 0.0
  %559 = vmatprep.subr.mxu0 0.0
  %560 = vmatpush1.msra.mxu0 0.0
  %561 = vmatprep.subr.mxu0 0.0
  %562 = vmatpush1.msra.mxu0 0.0
  %563 = vmatprep.subr.mxu0 0.0
  %564 = vmatpush1.msra.mxu0 0.0
  %565 = vmatprep.subr.mxu0 0.0
  %566 = vmatpush1.msra.mxu0 0.0
  %567 = vmatprep.subr.mxu0 0.0
  %568 = vmatpush1.msra.mxu0 0.0
  %569 = vmatprep.subr.mxu0 0.0
  %570 = vmatpush1.msra.mxu0 0.0
  %571 = vmatprep.subr.mxu0 0.0
  %572 = vmatpush1.msra.mxu0 0.0
  %573 = vmatprep.subr.mxu0 0.0
  %574 = vmatpush1.msra.mxu0 0.0
  %575 = vmatprep.subr.mxu0 0.0
  %576 = vmatpush1.msra.mxu0 0.0
  %577 = vmatprep.subr.mxu0 0.0
  %578 = vmatpush1.msra.mxu0 0.0
  %579 = vmatprep.subr.mxu0 0.0
  %580 = vmatpush1.msra.mxu0 0.0
  %581 = vmatprep.subr.mxu0 0.0
  %582 = vmatpush1.msra.mxu0 0.0
  %583 = vmatprep.subr.mxu0 0.0
  %584 = vmatpush1.msra.mxu0 0.0
  %585 = vmatprep.subr.mxu0 0.0
  %586 = vmatpush1.msra.mxu0 0.0
  %587 = vmatprep.subr.mxu0 0.0
  %588 = vmatpush1.msra.mxu0 0.0
  %589 = vmatprep.subr.mxu0 0.0
  %590 = vmatpush1.msra.mxu0 0.0
  %591 = vmatprep.subr.mxu0 0.0
  %592 = vmatpush1.msra.mxu0 0.0
  %593 = vmatprep.mubr.f32.mxu0 0.0
  %594 = vmatmul.mubr.f32.gmra.mrb[0].mxu0 %v524
  %v595 = vpop.f32.mrb[0].mxu0
  %v596 = vadd.f32 %v517, %v595
  %v597 = vpop.f32.mrb[0].mxu0
  %598 = vmatprep.mubr.f32.mxu0 0.0
  %599 = vmatmul.mubr.f32.gmra.mrb[0].mxu0 %v527
  %v600 = vpop.f32.mrb[0].mxu0
  %v601 = vadd.f32 %v521, %v600
  %v602 = vpop.f32.mrb[0].mxu0
  %603 = vdwg.mxu0
  %606 = vrot.lane.b32.xlu0 %v596, 4
  %v607 = vpop.permute.xlu0 %606
  %608 = vrot.lane.b32.xlu0 %v601, 4
  %v609 = vpop.permute.xlu0 %608
  %v612 = vadd.f32 %v213, %v607
  %v613 = vadd.f32 %v214, %v609
  %615 = vrot.lane.b32.xlu0 %v229, 4
  %v616 = vpop.permute.xlu0 %615
  %v618 = vmul.f32 %v612, %v616
  %v619 = vmul.f32 %v613, %v616
  %vm620 = vcmask 326688
  %621 = vst.msk [vmem:[#allocation2] sm:$0xff] %vm620, %v618
  %622 = vst.msk [vmem:[#allocation2 + $0x8] sm:$0xff] %vm620, %v619
  %v623 = vld [vmem:[#allocation2] sm:$0xff]
  %v624 = vld [vmem:[#allocation2 + $0x8] sm:$0xff]
  %v625 = vld [vmem:[%s2 + $0x50] sm:$0xff]
  %v626 = vld [vmem:[%s2 + $0x58] sm:$0xff]
  %v627 = vld [vmem:[%s2 + $0x60] sm:$0xff]
  %v628 = vld [vmem:[%s2 + $0x68] sm:$0xff]
  %v629 = vld [vmem:[%s2 + $0x70] sm:$0xff]
  %v630 = vld [vmem:[%s2 + $0x78] sm:$0xff]
  %v631 = vld [vmem:[%s2 + $0x80] sm:$0xff]
  %v632 = vld [vmem:[%s2 + $0x88] sm:$0xff]
  %635 = vrot.lane.b32.xlu0 %v618, 124
  %v636 = vpop.permute.xlu0 %635
  %637 = vrot.lane.b32.xlu0 %v619, 124
  %v638 = vpop.permute.xlu0 %637
  %v642 = vsel %vm222, %v627, 0
  %v645 = vsel %vm222, %v628, 0
  %647 = vmatprep.subr.mxu0 0.0
  %648 = vmatpush1.msra.mxu0 %v636
  %649 = vmatprep.subr.mxu0 0.0
  %650 = vmatpush1.msra.mxu0 %v638
  %651 = vmatprep.subr.mxu0 0.0
  %652 = vmatpush1.msra.mxu0 0.0
  %653 = vmatprep.subr.mxu0 0.0
  %654 = vmatpush1.msra.mxu0 0.0
  %655 = vmatprep.subr.mxu0 0.0
  %656 = vmatpush1.msra.mxu0 0.0
  %657 = vmatprep.subr.mxu0 0.0
  %658 = vmatpush1.msra.mxu0 0.0
  %659 = vmatprep.subr.mxu0 0.0
  %660 = vmatpush1.msra.mxu0 0.0
  %661 = vmatprep.subr.mxu0 0.0
  %662 = vmatpush1.msra.mxu0 0.0
  %663 = vmatprep.subr.mxu0 0.0
  %664 = vmatpush1.msra.mxu0 0.0
  %665 = vmatprep.subr.mxu0 0.0
  %666 = vmatpush1.msra.mxu0 0.0
  %667 = vmatprep.subr.mxu0 0.0
  %668 = vmatpush1.msra.mxu0 0.0
  %669 = vmatprep.subr.mxu0 0.0
  %670 = vmatpush1.msra.mxu0 0.0
  %671 = vmatprep.subr.mxu0 0.0
  %672 = vmatpush1.msra.mxu0 0.0
  %673 = vmatprep.subr.mxu0 0.0
  %674 = vmatpush1.msra.mxu0 0.0
  %675 = vmatprep.subr.mxu0 0.0
  %676 = vmatpush1.msra.mxu0 0.0
  %677 = vmatprep.subr.mxu0 0.0
  %678 = vmatpush1.msra.mxu0 0.0
  %679 = vmatprep.subr.mxu0 0.0
  %680 = vmatpush1.msra.mxu0 0.0
  %681 = vmatprep.subr.mxu0 0.0
  %682 = vmatpush1.msra.mxu0 0.0
  %683 = vmatprep.subr.mxu0 0.0
  %684 = vmatpush1.msra.mxu0 0.0
  %685 = vmatprep.subr.mxu0 0.0
  %686 = vmatpush1.msra.mxu0 0.0
  %687 = vmatprep.subr.mxu0 0.0
  %688 = vmatpush1.msra.mxu0 0.0
  %689 = vmatprep.subr.mxu0 0.0
  %690 = vmatpush1.msra.mxu0 0.0
  %691 = vmatprep.subr.mxu0 0.0
  %692 = vmatpush1.msra.mxu0 0.0
  %693 = vmatprep.subr.mxu0 0.0
  %694 = vmatpush1.msra.mxu0 0.0
  %695 = vmatprep.subr.mxu0 0.0
  %696 = vmatpush1.msra.mxu0 0.0
  %697 = vmatprep.subr.mxu0 0.0
  %698 = vmatpush1.msra.mxu0 0.0
  %699 = vmatprep.subr.mxu0 0.0
  %700 = vmatpush1.msra.mxu0 0.0
  %701 = vmatprep.subr.mxu0 0.0
  %702 = vmatpush1.msra.mxu0 0.0
  %703 = vmatprep.subr.mxu0 0.0
  %704 = vmatpush1.msra.mxu0 0.0
  %705 = vmatprep.subr.mxu0 0.0
  %706 = vmatpush1.msra.mxu0 0.0
  %707 = vmatprep.subr.mxu0 0.0
  %708 = vmatpush1.msra.mxu0 0.0
  %709 = vmatprep.subr.mxu0 0.0
  %710 = vmatpush1.msra.mxu0 0.0
  %711 = vmatprep.mubr.f32.mxu0 0.0
  %712 = vmatmul.mubr.f32.gmra.mrb[0].mxu0 %v642
  %v713 = vpop.f32.mrb[0].mxu0
  %v714 = vadd.f32 0.0, %v713
  %v715 = vpop.f32.mrb[0].mxu0
  %716 = vmatprep.mubr.f32.mxu0 0.0
  %717 = vmatmul.mubr.f32.gmra.mrb[0].mxu0 %v645
  %v718 = vpop.f32.mrb[0].mxu0
  %v719 = vadd.f32 0.0, %v718
  %v720 = vpop.f32.mrb[0].mxu0
  %721 = vdwg.mxu0
  %724 = vrot.lane.b32.xlu0 %v623, 126
  %v725 = vpop.permute.xlu0 %724
  %726 = vrot.lane.b32.xlu0 %v624, 126
  %v727 = vpop.permute.xlu0 %726
  %v731 = vsel %vm222, %v625, 0
  %v734 = vsel %vm222, %v626, 0
  %736 = vmatprep.subr.mxu0 0.0
  %737 = vmatpush1.msra.mxu0 %v725
  %738 = vmatprep.subr.mxu0 0.0
  %739 = vmatpush1.msra.mxu0 %v727
  %740 = vmatprep.subr.mxu0 0.0
  %741 = vmatpush1.msra.mxu0 0.0
  %742 = vmatprep.subr.mxu0 0.0
  %743 = vmatpush1.msra.mxu0 0.0
  %744 = vmatprep.subr.mxu0 0.0
  %745 = vmatpush1.msra.mxu0 0.0
  %746 = vmatprep.subr.mxu0 0.0
  %747 = vmatpush1.msra.mxu0 0.0
  %748 = vmatprep.subr.mxu0 0.0
  %749 = vmatpush1.msra.mxu0 0.0
  %750 = vmatprep.subr.mxu0 0.0
  %751 = vmatpush1.msra.mxu0 0.0
  %752 = vmatprep.subr.mxu0 0.0
  %753 = vmatpush1.msra.mxu0 0.0
  %754 = vmatprep.subr.mxu0 0.0
  %755 = vmatpush1.msra.mxu0 0.0
  %756 = vmatprep.subr.mxu0 0.0
  %757 = vmatpush1.msra.mxu0 0.0
  %758 = vmatprep.subr.mxu0 0.0
  %759 = vmatpush1.msra.mxu0 0.0
  %760 = vmatprep.subr.mxu0 0.0
  %761 = vmatpush1.msra.mxu0 0.0
  %762 = vmatprep.subr.mxu0 0.0
  %763 = vmatpush1.msra.mxu0 0.0
  %764 = vmatprep.subr.mxu0 0.0
  %765 = vmatpush1.msra.mxu0 0.0
  %766 = vmatprep.subr.mxu0 0.0
  %767 = vmatpush1.msra.mxu0 0.0
  %768 = vmatprep.subr.mxu0 0.0
  %769 = vmatpush1.msra.mxu0 0.0
  %770 = vmatprep.subr.mxu0 0.0
  %771 = vmatpush1.msra.mxu0 0.0
  %772 = vmatprep.subr.mxu0 0.0
  %773 = vmatpush1.msra.mxu0 0.0
  %774 = vmatprep.subr.mxu0 0.0
  %775 = vmatpush1.msra.mxu0 0.0
  %776 = vmatprep.subr.mxu0 0.0
  %777 = vmatpush1.msra.mxu0 0.0
  %778 = vmatprep.subr.mxu0 0.0
  %779 = vmatpush1.msra.mxu0 0.0
  %780 = vmatprep.subr.mxu0 0.0
  %781 = vmatpush1.msra.mxu0 0.0
  %782 = vmatprep.subr.mxu0 0.0
  %783 = vmatpush1.msra.mxu0 0.0
  %784 = vmatprep.subr.mxu0 0.0
  %785 = vmatpush1.msra.mxu0 0.0
  %786 = vmatprep.subr.mxu0 0.0
  %787 = vmatpush1.msra.mxu0 0.0
  %788 = vmatprep.subr.mxu0 0.0
  %789 = vmatpush1.msra.mxu0 0.0
  %790 = vmatprep.subr.mxu0 0.0
  %791 = vmatpush1.msra.mxu0 0.0
  %792 = vmatprep.subr.mxu0 0.0
  %793 = vmatpush1.msra.mxu0 0.0
  %794 = vmatprep.subr.mxu0 0.0
  %795 = vmatpush1.msra.mxu0 0.0
  %796 = vmatprep.subr.mxu0 0.0
  %797 = vmatpush1.msra.mxu0 0.0
  %798 = vmatprep.subr.mxu0 0.0
  %799 = vmatpush1.msra.mxu0 0.0
  %800 = vmatprep.mubr.f32.mxu0 0.0
  %801 = vmatmul.mubr.f32.gmra.mrb[0].mxu0 %v731
  %v802 = vpop.f32.mrb[0].mxu0
  %v803 = vadd.f32 %v714, %v802
  %v804 = vpop.f32.mrb[0].mxu0
  %805 = vmatprep.mubr.f32.mxu0 0.0
  %806 = vmatmul.mubr.f32.gmra.mrb[0].mxu0 %v734
  %v807 = vpop.f32.mrb[0].mxu0
  %v808 = vadd.f32 %v719, %v807
  %v809 = vpop.f32.mrb[0].mxu0
  %810 = vdwg.mxu0
  %811 = vrot.lane.b32.xlu0 %v623, 122
  %v812 = vpop.permute.xlu0 %811
  %813 = vrot.lane.b32.xlu0 %v624, 122
  %v814 = vpop.permute.xlu0 %813
  %v818 = vsel %vm222, %v629, 0
  %v821 = vsel %vm222, %v630, 0
  %823 = vmatprep.subr.mxu0 0.0
  %824 = vmatpush1.msra.mxu0 %v812
  %825 = vmatprep.subr.mxu0 0.0
  %826 = vmatpush1.msra.mxu0 %v814
  %827 = vmatprep.subr.mxu0 0.0
  %828 = vmatpush1.msra.mxu0 0.0
  %829 = vmatprep.subr.mxu0 0.0
  %830 = vmatpush1.msra.mxu0 0.0
  %831 = vmatprep.subr.mxu0 0.0
  %832 = vmatpush1.msra.mxu0 0.0
  %833 = vmatprep.subr.mxu0 0.0
  %834 = vmatpush1.msra.mxu0 0.0
  %835 = vmatprep.subr.mxu0 0.0
  %836 = vmatpush1.msra.mxu0 0.0
  %837 = vmatprep.subr.mxu0 0.0
  %838 = vmatpush1.msra.mxu0 0.0
  %839 = vmatprep.subr.mxu0 0.0
  %840 = vmatpush1.msra.mxu0 0.0
  %841 = vmatprep.subr.mxu0 0.0
  %842 = vmatpush1.msra.mxu0 0.0
  %843 = vmatprep.subr.mxu0 0.0
  %844 = vmatpush1.msra.mxu0 0.0
  %845 = vmatprep.subr.mxu0 0.0
  %846 = vmatpush1.msra.mxu0 0.0
  %847 = vmatprep.subr.mxu0 0.0
  %848 = vmatpush1.msra.mxu0 0.0
  %849 = vmatprep.subr.mxu0 0.0
  %850 = vmatpush1.msra.mxu0 0.0
  %851 = vmatprep.subr.mxu0 0.0
  %852 = vmatpush1.msra.mxu0 0.0
  %853 = vmatprep.subr.mxu0 0.0
  %854 = vmatpush1.msra.mxu0 0.0
  %855 = vmatprep.subr.mxu0 0.0
  %856 = vmatpush1.msra.mxu0 0.0
  %857 = vmatprep.subr.mxu0 0.0
  %858 = vmatpush1.msra.mxu0 0.0
  %859 = vmatprep.subr.mxu0 0.0
  %860 = vmatpush1.msra.mxu0 0.0
  %861 = vmatprep.subr.mxu0 0.0
  %862 = vmatpush1.msra.mxu0 0.0
  %863 = vmatprep.subr.mxu0 0.0
  %864 = vmatpush1.msra.mxu0 0.0
  %865 = vmatprep.subr.mxu0 0.0
  %866 = vmatpush1.msra.mxu0 0.0
  %867 = vmatprep.subr.mxu0 0.0
  %868 = vmatpush1.msra.mxu0 0.0
  %869 = vmatprep.subr.mxu0 0.0
  %870 = vmatpush1.msra.mxu0 0.0
  %871 = vmatprep.subr.mxu0 0.0
  %872 = vmatpush1.msra.mxu0 0.0
  %873 = vmatprep.subr.mxu0 0.0
  %874 = vmatpush1.msra.mxu0 0.0
  %875 = vmatprep.subr.mxu0 0.0
  %876 = vmatpush1.msra.mxu0 0.0
  %877 = vmatprep.subr.mxu0 0.0
  %878 = vmatpush1.msra.mxu0 0.0
  %879 = vmatprep.subr.mxu0 0.0
  %880 = vmatpush1.msra.mxu0 0.0
  %881 = vmatprep.subr.mxu0 0.0
  %882 = vmatpush1.msra.mxu0 0.0
  %883 = vmatprep.subr.mxu0 0.0
  %884 = vmatpush1.msra.mxu0 0.0
  %885 = vmatprep.subr.mxu0 0.0
  %886 = vmatpush1.msra.mxu0 0.0
  %887 = vmatprep.mubr.f32.mxu0 0.0
  %888 = vmatmul.mubr.f32.gmra.mrb[0].mxu0 %v818
  %v889 = vpop.f32.mrb[0].mxu0
  %v890 = vadd.f32 0.0, %v889
  %v891 = vpop.f32.mrb[0].mxu0
  %892 = vmatprep.mubr.f32.mxu0 0.0
  %893 = vmatmul.mubr.f32.gmra.mrb[0].mxu0 %v821
  %v894 = vpop.f32.mrb[0].mxu0
  %v895 = vadd.f32 0.0, %v894
  %v896 = vpop.f32.mrb[0].mxu0
  %897 = vdwg.mxu0
  %v898 = vadd.f32 %v803, %v890
  %v899 = vadd.f32 %v808, %v895
  %900 = vset.pattern.permute.xlu0 3
  %901 = vperm.xlu0 %900, %v17
  %v902 = vpop.permute.xlu0 %901
  %904 = vset.pattern.permute.xlu0 3
  %905 = vperm.xlu0 %904, %v18
  %v906 = vpop.permute.xlu0 %905
  %v908 = vadd.f32 %v898, %v902
  %v909 = vadd.f32 %v899, %v906
  %v910 = vmax.f32 %v908, 0.0
  %v911 = vmax.f32 %v909, 0.0
  %912 = vset.pattern.permute.xlu0 4
  %913 = vperm.xlu0 %912, %v17
  %v914 = vpop.permute.xlu0 %913
  %916 = vset.pattern.permute.xlu0 4
  %917 = vperm.xlu0 %916, %v18
  %v918 = vpop.permute.xlu0 %917
  %v921 = vsel %vm222, %v631, 0
  %v924 = vsel %vm222, %v632, 0
  %926 = vmatprep.subr.mxu0 0.0
  %927 = vmatpush1.msra.mxu0 %v910
  %928 = vmatprep.subr.mxu0 0.0
  %929 = vmatpush1.msra.mxu0 %v911
  %930 = vmatprep.subr.mxu0 0.0
  %931 = vmatpush1.msra.mxu0 0.0
  %932 = vmatprep.subr.mxu0 0.0
  %933 = vmatpush1.msra.mxu0 0.0
  %934 = vmatprep.subr.mxu0 0.0
  %935 = vmatpush1.msra.mxu0 0.0
  %936 = vmatprep.subr.mxu0 0.0
  %937 = vmatpush1.msra.mxu0 0.0
  %938 = vmatprep.subr.mxu0 0.0
  %939 = vmatpush1.msra.mxu0 0.0
  %940 = vmatprep.subr.mxu0 0.0
  %941 = vmatpush1.msra.mxu0 0.0
  %942 = vmatprep.subr.mxu0 0.0
  %943 = vmatpush1.msra.mxu0 0.0
  %944 = vmatprep.subr.mxu0 0.0
  %945 = vmatpush1.msra.mxu0 0.0
  %946 = vmatprep.subr.mxu0 0.0
  %947 = vmatpush1.msra.mxu0 0.0
  %948 = vmatprep.subr.mxu0 0.0
  %949 = vmatpush1.msra.mxu0 0.0
  %950 = vmatprep.subr.mxu0 0.0
  %951 = vmatpush1.msra.mxu0 0.0
  %952 = vmatprep.subr.mxu0 0.0
  %953 = vmatpush1.msra.mxu0 0.0
  %954 = vmatprep.subr.mxu0 0.0
  %955 = vmatpush1.msra.mxu0 0.0
  %956 = vmatprep.subr.mxu0 0.0
  %957 = vmatpush1.msra.mxu0 0.0
  %958 = vmatprep.subr.mxu0 0.0
  %959 = vmatpush1.msra.mxu0 0.0
  %960 = vmatprep.subr.mxu0 0.0
  %961 = vmatpush1.msra.mxu0 0.0
  %962 = vmatprep.subr.mxu0 0.0
  %963 = vmatpush1.msra.mxu0 0.0
  %964 = vmatprep.subr.mxu0 0.0
  %965 = vmatpush1.msra.mxu0 0.0
  %966 = vmatprep.subr.mxu0 0.0
  %967 = vmatpush1.msra.mxu0 0.0
  %968 = vmatprep.subr.mxu0 0.0
  %969 = vmatpush1.msra.mxu0 0.0
  %970 = vmatprep.subr.mxu0 0.0
  %971 = vmatpush1.msra.mxu0 0.0
  %972 = vmatprep.subr.mxu0 0.0
  %973 = vmatpush1.msra.mxu0 0.0
  %974 = vmatprep.subr.mxu0 0.0
  %975 = vmatpush1.msra.mxu0 0.0
  %976 = vmatprep.subr.mxu0 0.0
  %977 = vmatpush1.msra.mxu0 0.0
  %978 = vmatprep.subr.mxu0 0.0
  %979 = vmatpush1.msra.mxu0 0.0
  %980 = vmatprep.subr.mxu0 0.0
  %981 = vmatpush1.msra.mxu0 0.0
  %982 = vmatprep.subr.mxu0 0.0
  %983 = vmatpush1.msra.mxu0 0.0
  %984 = vmatprep.subr.mxu0 0.0
  %985 = vmatpush1.msra.mxu0 0.0
  %986 = vmatprep.subr.mxu0 0.0
  %987 = vmatpush1.msra.mxu0 0.0
  %988 = vmatprep.subr.mxu0 0.0
  %989 = vmatpush1.msra.mxu0 0.0
  %990 = vmatprep.mubr.f32.mxu0 0.0
  %991 = vmatmul.mubr.f32.gmra.mrb[0].mxu0 %v921
  %v992 = vpop.f32.mrb[0].mxu0
  %v993 = vadd.f32 %v914, %v992
  %v994 = vpop.f32.mrb[0].mxu0
  %995 = vmatprep.mubr.f32.mxu0 0.0
  %996 = vmatmul.mubr.f32.gmra.mrb[0].mxu0 %v924
  %v997 = vpop.f32.mrb[0].mxu0
  %v998 = vadd.f32 %v918, %v997
  %v999 = vpop.f32.mrb[0].mxu0
  %1000 = vdwg.mxu0
  %1003 = vrot.lane.b32.xlu0 %v993, 4
  %v1004 = vpop.permute.xlu0 %1003
  %1005 = vrot.lane.b32.xlu0 %v998, 4
  %v1006 = vpop.permute.xlu0 %1005
  %v1009 = vadd.f32 %v618, %v1004
  %v1010 = vadd.f32 %v619, %v1006
  %v1011 = vmul.f32 %v1009, %v616
  %v1012 = vmul.f32 %v1010, %v616
  %1013 = vst.msk [vmem:[#allocation2] sm:$0xff] %vm620, %v1011
  %1014 = vst.msk [vmem:[#allocation2 + $0x8] sm:$0xff] %vm620, %v1012
  %v1015 = vld [vmem:[#allocation2] sm:$0xff]
  %v1016 = vld [vmem:[#allocation2 + $0x8] sm:$0xff]
  %v1017 = vld [vmem:[%s2 + $0x90] sm:$0xff]
  %v1018 = vld [vmem:[%s2 + $0x98] sm:$0xff]
  %v1019 = vld [vmem:[%s2 + $0xa0] sm:$0xff]
  %v1020 = vld [vmem:[%s2 + $0xa8] sm:$0xff]
  %v1021 = vld [vmem:[%s2 + $0xb0] sm:$0xff]
  %v1022 = vld [vmem:[%s2 + $0xb8] sm:$0xff]
  %v1023 = vld [vmem:[%s2 + $0xc0] sm:$0xff]
  %v1024 = vld [vmem:[%s2 + $0xc8] sm:$0xff]
  %1027 = vrot.lane.b32.xlu0 %v1011, 124
  %v1028 = vpop.permute.xlu0 %1027
  %1029 = vrot.lane.b32.xlu0 %v1012, 124
  %v1030 = vpop.permute.xlu0 %1029
  %v1034 = vsel %vm222, %v1019, 0
  %v1037 = vsel %vm222, %v1020, 0
  %1039 = vmatprep.subr.mxu0 0.0
  %1040 = vmatpush1.msra.mxu0 %v1028
  %1041 = vmatprep.subr.mxu0 0.0
  %1042 = vmatpush1.msra.mxu0 %v1030
  %1043 = vmatprep.subr.mxu0 0.0
  %1044 = vmatpush1.msra.mxu0 0.0
  %1045 = vmatprep.subr.mxu0 0.0
  %1046 = vmatpush1.msra.mxu0 0.0
  %1047 = vmatprep.subr.mxu0 0.0
  %1048 = vmatpush1.msra.mxu0 0.0
  %1049 = vmatprep.subr.mxu0 0.0
  %1050 = vmatpush1.msra.mxu0 0.0
  %1051 = vmatprep.subr.mxu0 0.0
  %1052 = vmatpush1.msra.mxu0 0.0
  %1053 = vmatprep.subr.mxu0 0.0
  %1054 = vmatpush1.msra.mxu0 0.0
  %1055 = vmatprep.subr.mxu0 0.0
  %1056 = vmatpush1.msra.mxu0 0.0
  %1057 = vmatprep.subr.mxu0 0.0
  %1058 = vmatpush1.msra.mxu0 0.0
  %1059 = vmatprep.subr.mxu0 0.0
  %1060 = vmatpush1.msra.mxu0 0.0
  %1061 = vmatprep.subr.mxu0 0.0
  %1062 = vmatpush1.msra.mxu0 0.0
  %1063 = vmatprep.subr.mxu0 0.0
  %1064 = vmatpush1.msra.mxu0 0.0
  %1065 = vmatprep.subr.mxu0 0.0
  %1066 = vmatpush1.msra.mxu0 0.0
  %1067 = vmatprep.subr.mxu0 0.0
  %1068 = vmatpush1.msra.mxu0 0.0
  %1069 = vmatprep.subr.mxu0 0.0
  %1070 = vmatpush1.msra.mxu0 0.0
  %1071 = vmatprep.subr.mxu0 0.0
  %1072 = vmatpush1.msra.mxu0 0.0
  %1073 = vmatprep.subr.mxu0 0.0
  %1074 = vmatpush1.msra.mxu0 0.0
  %1075 = vmatprep.subr.mxu0 0.0
  %1076 = vmatpush1.msra.mxu0 0.0
  %1077 = vmatprep.subr.mxu0 0.0
  %1078 = vmatpush1.msra.mxu0 0.0
  %1079 = vmatprep.subr.mxu0 0.0
  %1080 = vmatpush1.msra.mxu0 0.0
  %1081 = vmatprep.subr.mxu0 0.0
  %1082 = vmatpush1.msra.mxu0 0.0
  %1083 = vmatprep.subr.mxu0 0.0
  %1084 = vmatpush1.msra.mxu0 0.0
  %1085 = vmatprep.subr.mxu0 0.0
  %1086 = vmatpush1.msra.mxu0 0.0
  %1087 = vmatprep.subr.mxu0 0.0
  %1088 = vmatpush1.msra.mxu0 0.0
  %1089 = vmatprep.subr.mxu0 0.0
  %1090 = vmatpush1.msra.mxu0 0.0
  %1091 = vmatprep.subr.mxu0 0.0
  %1092 = vmatpush1.msra.mxu0 0.0
  %1093 = vmatprep.subr.mxu0 0.0
  %1094 = vmatpush1.msra.mxu0 0.0
  %1095 = vmatprep.subr.mxu0 0.0
  %1096 = vmatpush1.msra.mxu0 0.0
  %1097 = vmatprep.subr.mxu0 0.0
  %1098 = vmatpush1.msra.mxu0 0.0
  %1099 = vmatprep.subr.mxu0 0.0
  %1100 = vmatpush1.msra.mxu0 0.0
  %1101 = vmatprep.subr.mxu0 0.0
  %1102 = vmatpush1.msra.mxu0 0.0
  %1103 = vmatprep.mubr.f32.mxu0 0.0
  %1104 = vmatmul.mubr.f32.gmra.mrb[0].mxu0 %v1034
  %v1105 = vpop.f32.mrb[0].mxu0
  %v1106 = vadd.f32 0.0, %v1105
  %v1107 = vpop.f32.mrb[0].mxu0
  %1108 = vmatprep.mubr.f32.mxu0 0.0
  %1109 = vmatmul.mubr.f32.gmra.mrb[0].mxu0 %v1037
  %v1110 = vpop.f32.mrb[0].mxu0
  %v1111 = vadd.f32 0.0, %v1110
  %v1112 = vpop.f32.mrb[0].mxu0
  %1113 = vdwg.mxu0
  %v1115 = vsel %vm222, %v1017, 0
  %v1118 = vsel %vm222, %v1018, 0
  %1120 = vmatprep.subr.mxu0 0.0
  %1121 = vmatpush1.msra.mxu0 %v1015
  %1122 = vmatprep.subr.mxu0 0.0
  %1123 = vmatpush1.msra.mxu0 %v1016
  %1124 = vmatprep.subr.mxu0 0.0
  %1125 = vmatpush1.msra.mxu0 0.0
  %1126 = vmatprep.subr.mxu0 0.0
  %1127 = vmatpush1.msra.mxu0 0.0
  %1128 = vmatprep.subr.mxu0 0.0
  %1129 = vmatpush1.msra.mxu0 0.0
  %1130 = vmatprep.subr.mxu0 0.0
  %1131 = vmatpush1.msra.mxu0 0.0
  %1132 = vmatprep.subr.mxu0 0.0
  %1133 = vmatpush1.msra.mxu0 0.0
  %1134 = vmatprep.subr.mxu0 0.0
  %1135 = vmatpush1.msra.mxu0 0.0
  %1136 = vmatprep.subr.mxu0 0.0
  %1137 = vmatpush1.msra.mxu0 0.0
  %1138 = vmatprep.subr.mxu0 0.0
  %1139 = vmatpush1.msra.mxu0 0.0
  %1140 = vmatprep.subr.mxu0 0.0
  %1141 = vmatpush1.msra.mxu0 0.0
  %1142 = vmatprep.subr.mxu0 0.0
  %1143 = vmatpush1.msra.mxu0 0.0
  %1144 = vmatprep.subr.mxu0 0.0
  %1145 = vmatpush1.msra.mxu0 0.0
  %1146 = vmatprep.subr.mxu0 0.0
  %1147 = vmatpush1.msra.mxu0 0.0
  %1148 = vmatprep.subr.mxu0 0.0
  %1149 = vmatpush1.msra.mxu0 0.0
  %1150 = vmatprep.subr.mxu0 0.0
  %1151 = vmatpush1.msra.mxu0 0.0
  %1152 = vmatprep.subr.mxu0 0.0
  %1153 = vmatpush1.msra.mxu0 0.0
  %1154 = vmatprep.subr.mxu0 0.0
  %1155 = vmatpush1.msra.mxu0 0.0
  %1156 = vmatprep.subr.mxu0 0.0
  %1157 = vmatpush1.msra.mxu0 0.0
  %1158 = vmatprep.subr.mxu0 0.0
  %1159 = vmatpush1.msra.mxu0 0.0
  %1160 = vmatprep.subr.mxu0 0.0
  %1161 = vmatpush1.msra.mxu0 0.0
  %1162 = vmatprep.subr.mxu0 0.0
  %1163 = vmatpush1.msra.mxu0 0.0
  %1164 = vmatprep.subr.mxu0 0.0
  %1165 = vmatpush1.msra.mxu0 0.0
  %1166 = vmatprep.subr.mxu0 0.0
  %1167 = vmatpush1.msra.mxu0 0.0
  %1168 = vmatprep.subr.mxu0 0.0
  %1169 = vmatpush1.msra.mxu0 0.0
  %1170 = vmatprep.subr.mxu0 0.0
  %1171 = vmatpush1.msra.mxu0 0.0
  %1172 = vmatprep.subr.mxu0 0.0
  %1173 = vmatpush1.msra.mxu0 0.0
  %1174 = vmatprep.subr.mxu0 0.0
  %1175 = vmatpush1.msra.mxu0 0.0
  %1176 = vmatprep.subr.mxu0 0.0
  %1177 = vmatpush1.msra.mxu0 0.0
  %1178 = vmatprep.subr.mxu0 0.0
  %1179 = vmatpush1.msra.mxu0 0.0
  %1180 = vmatprep.subr.mxu0 0.0
  %1181 = vmatpush1.msra.mxu0 0.0
  %1182 = vmatprep.subr.mxu0 0.0
  %1183 = vmatpush1.msra.mxu0 0.0
  %1184 = vmatprep.mubr.f32.mxu0 0.0
  %1185 = vmatmul.mubr.f32.gmra.mrb[0].mxu0 %v1115
  %v1186 = vpop.f32.mrb[0].mxu0
  %v1187 = vadd.f32 %v1106, %v1186
  %v1188 = vpop.f32.mrb[0].mxu0
  %1189 = vmatprep.mubr.f32.mxu0 0.0
  %1190 = vmatmul.mubr.f32.gmra.mrb[0].mxu0 %v1118
  %v1191 = vpop.f32.mrb[0].mxu0
  %v1192 = vadd.f32 %v1111, %v1191
  %v1193 = vpop.f32.mrb[0].mxu0
  %1194 = vdwg.mxu0
  %1197 = vrot.lane.b32.xlu0 %v1015, 120
  %v1198 = vpop.permute.xlu0 %1197
  %1199 = vrot.lane.b32.xlu0 %v1016, 120
  %v1200 = vpop.permute.xlu0 %1199
  %v1204 = vsel %vm222, %v1021, 0
  %v1207 = vsel %vm222, %v1022, 0
  %1209 = vmatprep.subr.mxu0 0.0
  %1210 = vmatpush1.msra.mxu0 %v1198
  %1211 = vmatprep.subr.mxu0 0.0
  %1212 = vmatpush1.msra.mxu0 %v1200
  %1213 = vmatprep.subr.mxu0 0.0
  %1214 = vmatpush1.msra.mxu0 0.0
  %1215 = vmatprep.subr.mxu0 0.0
  %1216 = vmatpush1.msra.mxu0 0.0
  %1217 = vmatprep.subr.mxu0 0.0
  %1218 = vmatpush1.msra.mxu0 0.0
  %1219 = vmatprep.subr.mxu0 0.0
  %1220 = vmatpush1.msra.mxu0 0.0
  %1221 = vmatprep.subr.mxu0 0.0
  %1222 = vmatpush1.msra.mxu0 0.0
  %1223 = vmatprep.subr.mxu0 0.0
  %1224 = vmatpush1.msra.mxu0 0.0
  %1225 = vmatprep.subr.mxu0 0.0
  %1226 = vmatpush1.msra.mxu0 0.0
  %1227 = vmatprep.subr.mxu0 0.0
  %1228 = vmatpush1.msra.mxu0 0.0
  %1229 = vmatprep.subr.mxu0 0.0
  %1230 = vmatpush1.msra.mxu0 0.0
  %1231 = vmatprep.subr.mxu0 0.0
  %1232 = vmatpush1.msra.mxu0 0.0
  %1233 = vmatprep.subr.mxu0 0.0
  %1234 = vmatpush1.msra.mxu0 0.0
  %1235 = vmatprep.subr.mxu0 0.0
  %1236 = vmatpush1.msra.mxu0 0.0
  %1237 = vmatprep.subr.mxu0 0.0
  %1238 = vmatpush1.msra.mxu0 0.0
  %1239 = vmatprep.subr.mxu0 0.0
  %1240 = vmatpush1.msra.mxu0 0.0
  %1241 = vmatprep.subr.mxu0 0.0
  %1242 = vmatpush1.msra.mxu0 0.0
  %1243 = vmatprep.subr.mxu0 0.0
  %1244 = vmatpush1.msra.mxu0 0.0
  %1245 = vmatprep.subr.mxu0 0.0
  %1246 = vmatpush1.msra.mxu0 0.0
  %1247 = vmatprep.subr.mxu0 0.0
  %1248 = vmatpush1.msra.mxu0 0.0
  %1249 = vmatprep.subr.mxu0 0.0
  %1250 = vmatpush1.msra.mxu0 0.0
  %1251 = vmatprep.subr.mxu0 0.0
  %1252 = vmatpush1.msra.mxu0 0.0
  %1253 = vmatprep.subr.mxu0 0.0
  %1254 = vmatpush1.msra.mxu0 0.0
  %1255 = vmatprep.subr.mxu0 0.0
  %1256 = vmatpush1.msra.mxu0 0.0
  %1257 = vmatprep.subr.mxu0 0.0
  %1258 = vmatpush1.msra.mxu0 0.0
  %1259 = vmatprep.subr.mxu0 0.0
  %1260 = vmatpush1.msra.mxu0 0.0
  %1261 = vmatprep.subr.mxu0 0.0
  %1262 = vmatpush1.msra.mxu0 0.0
  %1263 = vmatprep.subr.mxu0 0.0
  %1264 = vmatpush1.msra.mxu0 0.0
  %1265 = vmatprep.subr.mxu0 0.0
  %1266 = vmatpush1.msra.mxu0 0.0
  %1267 = vmatprep.subr.mxu0 0.0
  %1268 = vmatpush1.msra.mxu0 0.0
  %1269 = vmatprep.subr.mxu0 0.0
  %1270 = vmatpush1.msra.mxu0 0.0
  %1271 = vmatprep.subr.mxu0 0.0
  %1272 = vmatpush1.msra.mxu0 0.0
  %1273 = vmatprep.mubr.f32.mxu0 0.0
  %1274 = vmatmul.mubr.f32.gmra.mrb[0].mxu0 %v1204
  %v1275 = vpop.f32.mrb[0].mxu0
  %v1276 = vadd.f32 0.0, %v1275
  %v1277 = vpop.f32.mrb[0].mxu0
  %1278 = vmatprep.mubr.f32.mxu0 0.0
  %1279 = vmatmul.mubr.f32.gmra.mrb[0].mxu0 %v1207
  %v1280 = vpop.f32.mrb[0].mxu0
  %v1281 = vadd.f32 0.0, %v1280
  %v1282 = vpop.f32.mrb[0].mxu0
  %1283 = vdwg.mxu0
  %v1284 = vadd.f32 %v1187, %v1276
  %v1285 = vadd.f32 %v1192, %v1281
  %1286 = vset.pattern.permute.xlu0 5
  %1287 = vperm.xlu0 %1286, %v17
  %v1288 = vpop.permute.xlu0 %1287
  %1290 = vset.pattern.permute.xlu0 5
  %1291 = vperm.xlu0 %1290, %v18
  %v1292 = vpop.permute.xlu0 %1291
  %v1294 = vadd.f32 %v1284, %v1288
  %v1295 = vadd.f32 %v1285, %v1292
  %v1296 = vmax.f32 %v1294, 0.0
  %v1297 = vmax.f32 %v1295, 0.0
  %1298 = vset.pattern.permute.xlu0 6
  %1299 = vperm.xlu0 %1298, %v17
  %v1300 = vpop.permute.xlu0 %1299
  %1302 = vset.pattern.permute.xlu0 6
  %1303 = vperm.xlu0 %1302, %v18
  %v1304 = vpop.permute.xlu0 %1303
  %v1307 = vsel %vm222, %v1023, 0
  %v1310 = vsel %vm222, %v1024, 0
  %1312 = vmatprep.subr.mxu0 0.0
  %1313 = vmatpush1.msra.mxu0 %v1296
  %1314 = vmatprep.subr.mxu0 0.0
  %1315 = vmatpush1.msra.mxu0 %v1297
  %1316 = vmatprep.subr.mxu0 0.0
  %1317 = vmatpush1.msra.mxu0 0.0
  %1318 = vmatprep.subr.mxu0 0.0
  %1319 = vmatpush1.msra.mxu0 0.0
  %1320 = vmatprep.subr.mxu0 0.0
  %1321 = vmatpush1.msra.mxu0 0.0
  %1322 = vmatprep.subr.mxu0 0.0
  %1323 = vmatpush1.msra.mxu0 0.0
  %1324 = vmatprep.subr.mxu0 0.0
  %1325 = vmatpush1.msra.mxu0 0.0
  %1326 = vmatprep.subr.mxu0 0.0
  %1327 = vmatpush1.msra.mxu0 0.0
  %1328 = vmatprep.subr.mxu0 0.0
  %1329 = vmatpush1.msra.mxu0 0.0
  %1330 = vmatprep.subr.mxu0 0.0
  %1331 = vmatpush1.msra.mxu0 0.0
  %1332 = vmatprep.subr.mxu0 0.0
  %1333 = vmatpush1.msra.mxu0 0.0
  %1334 = vmatprep.subr.mxu0 0.0
  %1335 = vmatpush1.msra.mxu0 0.0
  %1336 = vmatprep.subr.mxu0 0.0
  %1337 = vmatpush1.msra.mxu0 0.0
  %1338 = vmatprep.subr.mxu0 0.0
  %1339 = vmatpush1.msra.mxu0 0.0
  %1340 = vmatprep.subr.mxu0 0.0
  %1341 = vmatpush1.msra.mxu0 0.0
  %1342 = vmatprep.subr.mxu0 0.0
  %1343 = vmatpush1.msra.mxu0 0.0
  %1344 = vmatprep.subr.mxu0 0.0
  %1345 = vmatpush1.msra.mxu0 0.0
  %1346 = vmatprep.subr.mxu0 0.0
  %1347 = vmatpush1.msra.mxu0 0.0
  %1348 = vmatprep.subr.mxu0 0.0
  %1349 = vmatpush1.msra.mxu0 0.0
  %1350 = vmatprep.subr.mxu0 0.0
  %1351 = vmatpush1.msra.mxu0 0.0
  %1352 = vmatprep.subr.mxu0 0.0
  %1353 = vmatpush1.msra.mxu0 0.0
  %1354 = vmatprep.subr.mxu0 0.0
  %1355 = vmatpush1.msra.mxu0 0.0
  %1356 = vmatprep.subr.mxu0 0.0
  %1357 = vmatpush1.msra.mxu0 0.0
  %1358 = vmatprep.subr.mxu0 0.0
  %1359 = vmatpush1.msra.mxu0 0.0
  %1360 = vmatprep.subr.mxu0 0.0
  %1361 = vmatpush1.msra.mxu0 0.0
  %1362 = vmatprep.subr.mxu0 0.0
  %1363 = vmatpush1.msra.mxu0 0.0
  %1364 = vmatprep.subr.mxu0 0.0
  %1365 = vmatpush1.msra.mxu0 0.0
  %1366 = vmatprep.subr.mxu0 0.0
  %1367 = vmatpush1.msra.mxu0 0.0
  %1368 = vmatprep.subr.mxu0 0.0
  %1369 = vmatpush1.msra.mxu0 0.0
  %1370 = vmatprep.subr.mxu0 0.0
  %1371 = vmatpush1.msra.mxu0 0.0
  %1372 = vmatprep.subr.mxu0 0.0
  %1373 = vmatpush1.msra.mxu0 0.0
  %1374 = vmatprep.subr.mxu0 0.0
  %1375 = vmatpush1.msra.mxu0 0.0
  %1376 = vmatprep.mubr.f32.mxu0 0.0
  %1377 = vmatmul.mubr.f32.gmra.mrb[0].mxu0 %v1307
  %v1378 = vpop.f32.mrb[0].mxu0
  %v1379 = vadd.f32 %v1300, %v1378
  %v1380 = vpop.f32.mrb[0].mxu0
  %1381 = vmatprep.mubr.f32.mxu0 0.0
  %1382 = vmatmul.mubr.f32.gmra.mrb[0].mxu0 %v1310
  %v1383 = vpop.f32.mrb[0].mxu0
  %v1384 = vadd.f32 %v1304, %v1383
  %v1385 = vpop.f32.mrb[0].mxu0
  %1386 = vdwg.mxu0
  %1389 = vrot.lane.b32.xlu0 %v1379, 4
  %v1390 = vpop.permute.xlu0 %1389
  %1391 = vrot.lane.b32.xlu0 %v1384, 4
  %v1392 = vpop.permute.xlu0 %1391
  %v1395 = vadd.f32 %v1011, %v1390
  %v1396 = vadd.f32 %v1012, %v1392
  %v1397 = vmul.f32 %v1395, %v616
  %v1398 = vmul.f32 %v1396, %v616
  %v1399 = vld [vmem:[%s2 + $0xd0] sm:$0xff]
  %1400 = vset.pattern.permute.xlu0 7
  %1401 = vperm.xlu0 %1400, %v17
  %v1402 = vpop.permute.xlu0 %1401
  %1406 = vrot.lane.b32.xlu0 %v1397, 124
  %v1407 = vpop.permute.xlu0 %1406
  %1408 = vrot.lane.b32.xlu0 %v1398, 124
  %v1409 = vpop.permute.xlu0 %1408
  %v1413 = vsel %vm222, %v1399, 0
  %1415 = vmatprep.subr.mxu0 0.0
  %1416 = vmatpush1.msra.mxu0 %v1407
  %1417 = vmatprep.subr.mxu0 0.0
  %1418 = vmatpush1.msra.mxu0 %v1409
  %1419 = vmatprep.subr.mxu0 0.0
  %1420 = vmatpush1.msra.mxu0 0.0
  %1421 = vmatprep.subr.mxu0 0.0
  %1422 = vmatpush1.msra.mxu0 0.0
  %1423 = vmatprep.subr.mxu0 0.0
  %1424 = vmatpush1.msra.mxu0 0.0
  %1425 = vmatprep.subr.mxu0 0.0
  %1426 = vmatpush1.msra.mxu0 0.0
  %1427 = vmatprep.subr.mxu0 0.0
  %1428 = vmatpush1.msra.mxu0 0.0
  %1429 = vmatprep.subr.mxu0 0.0
  %1430 = vmatpush1.msra.mxu0 0.0
  %1431 = vmatprep.subr.mxu0 0.0
  %1432 = vmatpush1.msra.mxu0 0.0
  %1433 = vmatprep.subr.mxu0 0.0
  %1434 = vmatpush1.msra.mxu0 0.0
  %1435 = vmatprep.subr.mxu0 0.0
  %1436 = vmatpush1.msra.mxu0 0.0
  %1437 = vmatprep.subr.mxu0 0.0
  %1438 = vmatpush1.msra.mxu0 0.0
  %1439 = vmatprep.subr.mxu0 0.0
  %1440 = vmatpush1.msra.mxu0 0.0
  %1441 = vmatprep.subr.mxu0 0.0
  %1442 = vmatpush1.msra.mxu0 0.0
  %1443 = vmatprep.subr.mxu0 0.0
  %1444 = vmatpush1.msra.mxu0 0.0
  %1445 = vmatprep.subr.mxu0 0.0
  %1446 = vmatpush1.msra.mxu0 0.0
  %1447 = vmatprep.subr.mxu0 0.0
  %1448 = vmatpush1.msra.mxu0 0.0
  %1449 = vmatprep.subr.mxu0 0.0
  %1450 = vmatpush1.msra.mxu0 0.0
  %1451 = vmatprep.subr.mxu0 0.0
  %1452 = vmatpush1.msra.mxu0 0.0
  %1453 = vmatprep.subr.mxu0 0.0
  %1454 = vmatpush1.msra.mxu0 0.0
  %1455 = vmatprep.subr.mxu0 0.0
  %1456 = vmatpush1.msra.mxu0 0.0
  %1457 = vmatprep.subr.mxu0 0.0
  %1458 = vmatpush1.msra.mxu0 0.0
  %1459 = vmatprep.subr.mxu0 0.0
  %1460 = vmatpush1.msra.mxu0 0.0
  %1461 = vmatprep.subr.mxu0 0.0
  %1462 = vmatpush1.msra.mxu0 0.0
  %1463 = vmatprep.subr.mxu0 0.0
  %1464 = vmatpush1.msra.mxu0 0.0
  %1465 = vmatprep.subr.mxu0 0.0
  %1466 = vmatpush1.msra.mxu0 0.0
  %1467 = vmatprep.subr.mxu0 0.0
  %1468 = vmatpush1.msra.mxu0 0.0
  %1469 = vmatprep.subr.mxu0 0.0
  %1470 = vmatpush1.msra.mxu0 0.0
  %1471 = vmatprep.subr.mxu0 0.0
  %1472 = vmatpush1.msra.mxu0 0.0
  %1473 = vmatprep.subr.mxu0 0.0
  %1474 = vmatpush1.msra.mxu0 0.0
  %1475 = vmatprep.subr.mxu0 0.0
  %1476 = vmatpush1.msra.mxu0 0.0
  %1477 = vmatprep.subr.mxu0 0.0
  %1478 = vmatpush1.msra.mxu0 0.0
  %1479 = vmatprep.mubr.f32.mxu0 0.0
  %1480 = vmatmul.mubr.f32.gmra.mrb[0].mxu0 %v1413
  %v1481 = vpop.f32.mrb[0].mxu0
  %v1482 = vadd.f32 %v1402, %v1481
  %v1483 = vpop.f32.mrb[0].mxu0
  %1484 = vdwg.mxu0
  %v1485 = vmul.f32 %v1482, %v229
  %1486 = vst.msk [vmem:[%s3] sm:$0xff] %vm222, %v1485
  %1488 = vrot.lane.b32.xlu0 %v1485, 108
  %v1489 = vpop.permute.xlu0 %1488
  %s1491 = scalar_lea.vmem %s3, 8
  %1492 = vst.msk [vmem:[%s1491] sm:$0xff] %vm222, %v1489
  // Predicated region
  $region14: #{single_stage_model_pallas.1} parent=0 // pred_check
    _
  $region15: #{single_stage_model_pallas.1} parent=0 // pred_check_branch
    %1494 = sbr.rel (0) target = $region17
  $region16: #{single_stage_model_pallas.1} parent=0 // pred_region
    _
  $region17: #{single_stage_model_pallas.1} parent=0 // pred_fallthru
    _
  // Predicated region
  $region18: #{single_stage_model_pallas.1} parent=0 // pred_check
    _
  $region19: #{single_stage_model_pallas.1} parent=0 // pred_check_branch
    %1496 = sbr.rel (0) target = $region21
  $region20: #{single_stage_model_pallas.1} parent=0 // pred_region
    _
  $region21: #{single_stage_model_pallas.1} parent=0 // pred_fallthru
    _

</llo_original>
